<compile_context>
chip_gen: v6e
topology: v6e:2x2x1
jax: 0.10.0
libtpu: 0.0.40
codegen_flags: <defaults>
</compile_context>

<pallas_src>
import functools

import jax
import jax.numpy as jnp
from jax.experimental import pallas as pl
from jax.experimental.pallas import tpu as pltpu


F_IN = 4    # input features (state dim)
H1 = 256    # fcV1 out
H2 = 256    # fcV2 out


def vnet_kernel(x_ref, w1_ref, b1_ref, w2_ref, b2_ref, w3_ref, b3_ref, o_ref):
    # x_ref:  [4,  TB] bf16   (batch on lanes)
    # w1_ref: [256, 4] bf16,  b1_ref: [256, 1] f32
    # w2_ref: [256,256] bf16, b2_ref: [256, 1] f32
    # w3_ref: [1, 256] bf16,  b3_ref: [1, 1]   f32
    # o_ref:  [1, TB] f32
    x = x_ref[...].astype(jnp.float32)            # [4, TB]
    w1 = w1_ref[...].astype(jnp.float32)          # [256, 4]

    # Layer 1: K=4 contraction on the VPU as 4 broadcast FMAs (MXU would be
    # <4% occupied); bias folded into the initial accumulator.
    h1 = b1_ref[...] + w1[:, 0:1] * x[0:1, :]     # [256, TB] f32
    for k in range(1, F_IN):
        h1 = h1 + w1[:, k:k + 1] * x[k:k + 1, :]
    h1 = jnp.maximum(h1, 0.0)

    # Layer 2: bf16 MXU matmul with f32 accumulation; fused bias + ReLU.
    h2 = jnp.dot(w2_ref[...], h1.astype(jnp.bfloat16),
                 preferred_element_type=jnp.float32)      # [256, TB]
    h2 = jnp.maximum(h2 + b2_ref[...], 0.0)

    # Head: [1,256] @ [256,TB] -> [1,TB]  (lane-dense, unmasked store).
    v = jnp.dot(w3_ref[...], h2.astype(jnp.bfloat16),
                preferred_element_type=jnp.float32)
    o_ref[...] = (v + b3_ref[...]).astype(o_ref.dtype)


def _round_up(n, m):
    return ((n + m - 1) // m) * m


@functools.partial(jax.jit, static_argnames=("tb_max",))
def vnetwork_forward(x, params, *, tb_max=2048):
    """x: [B, 4] float32 (torch layout).  Returns V(x): [B, 1] float32."""
    B = x.shape[0]

    # Lane tile for the batch axis: multiple of 256 (full MXU width), capped at
    # tb_max so per-step VMEM (x tile + h1 + h2 + resident weights) stays small.
    TB = min(tb_max, _round_up(B, 256))
    Bp = _round_up(B, TB)

    xt = jnp.transpose(x).astype(jnp.bfloat16)            # [4, B] batch-on-lanes
    if Bp != B:
        xt = jnp.pad(xt, ((0, 0), (0, Bp - B)))

    w1 = params["w1"].astype(jnp.bfloat16)                # [256, 4]
    w2 = params["w2"].astype(jnp.bfloat16)                # [256, 256]
    w3 = params["w3"].astype(jnp.bfloat16)                # [1, 256]
    b1 = params["b1"].reshape(H1, 1).astype(jnp.float32)
    b2 = params["b2"].reshape(H2, 1).astype(jnp.float32)
    b3 = params["b3"].reshape(1, 1).astype(jnp.float32)

    # Weights/biases: constant index_map -> stay resident in VMEM across grid.
    resident = lambda shape: pl.BlockSpec(shape, lambda i: (0, 0))

    out = pl.pallas_call(
        vnet_kernel,
        out_shape=jax.ShapeDtypeStruct((1, Bp), jnp.float32),
        grid=(pl.cdiv(Bp, TB),),
        in_specs=[
            pl.BlockSpec((F_IN, TB), lambda i: (0, i)),   # x tile, pipelined
            resident(w1.shape), resident(b1.shape),
            resident(w2.shape), resident(b2.shape),
            resident(w3.shape), resident(b3.shape),
        ],
        out_specs=pl.BlockSpec((1, TB), lambda i: (0, i)),
        compiler_params=pltpu.CompilerParams(
            dimension_semantics=("parallel",),            # shard batch over TCs (v7x)
        ),
    )(xt, w1, b1, w2, b2, w3, b3)

    return jnp.transpose(out[:, :B])                      # [B, 1]


def init_params(key):
    """Matches torch.nn.Linear default init: U(-1/sqrt(fan_in), +1/sqrt(fan_in)).
    Weights kept in PyTorch-native [out_features, in_features] layout."""
    sizes = [(F_IN, H1), (H1, H2), (H2, 1)]
    params = {}
    keys = jax.random.split(key, 2 * len(sizes))
    for i, (fan_in, fan_out) in enumerate(sizes):
        bound = 1.0 / (fan_in ** 0.5)
        params[f"w{i+1}"] = jax.random.uniform(
            keys[2 * i], (fan_out, fan_in), jnp.float32, -bound, bound)
        params[f"b{i+1}"] = jax.random.uniform(
            keys[2 * i + 1], (fan_out,), jnp.float32, -bound, bound)
    return params


def vnetwork_reference(x, params):
    """Pure-JAX f32 reference matching the PyTorch forward."""
    h = jnp.maximum(x @ params["w1"].T + params["b1"], 0.0)
    h = jnp.maximum(h @ params["w2"].T + params["b2"], 0.0)
    return h @ params["w3"].T + params["b3"]


if __name__ == "__main__":
    key = jax.random.PRNGKey(0)
    pkey, xkey = jax.random.split(key)
    params = init_params(pkey)

    # Small batch (CartPole-like 4-dim states), one single-tile larger batch,
    # and one batch that exercises the multi-tile grid + lane padding path.
    for B in (8, 1500, 4097):
        x = jax.random.normal(jax.random.fold_in(xkey, B), (B, F_IN),
                              dtype=jnp.float32)
        out = jax.block_until_ready(vnetwork_forward(x, params))
        ref = vnetwork_reference(x, params)
        assert out.shape == (B, 1), f"bad shape {out.shape} for B={B}"
        max_err = float(jnp.max(jnp.abs(out - ref)))
        # bf16 weights/activations => loosen tolerance vs the f32 reference.
        assert jnp.allclose(out, ref, atol=3e-2, rtol=3e-2), (
            f"mismatch vs reference at B={B}, max_err={max_err}")

    print("KERNEL_OK")
</pallas_src>

<mosaic_0001>
module attributes {stable_mosaic.version = 11 : i64} {
  func.func @vnet_kernel(%arg0: i32, %arg1: memref<4x256xbf16, #tpu.memory_space<vmem>>, %arg2: memref<256x4xbf16, #tpu.memory_space<vmem>>, %arg3: memref<256x1xf32, #tpu.memory_space<vmem>>, %arg4: memref<256x256xbf16, #tpu.memory_space<vmem>>, %arg5: memref<256x1xf32, #tpu.memory_space<vmem>>, %arg6: memref<1x256xbf16, #tpu.memory_space<vmem>>, %arg7: memref<1x1xf32, #tpu.memory_space<vmem>>, %arg8: memref<1x256xf32, #tpu.memory_space<vmem>>) attributes {dimension_semantics = [#tpu.dimension_semantics<parallel>], iteration_bounds = array<i64: 1>, scalar_prefetch = 0 : i64, scratch_operands = 0 : i64, tpu.core_type = #tpu.core_type<tc>, window_params = [{transform_indices = @transform_0, window_bounds = array<i64: 4, 256>}, {pipeline_mode = #tpu.pipeline_mode<synchronous>, transform_indices = @transform_1, window_bounds = array<i64: 256, 4>}, {pipeline_mode = #tpu.pipeline_mode<synchronous>, transform_indices = @transform_2, window_bounds = array<i64: 256, 1>}, {pipeline_mode = #tpu.pipeline_mode<synchronous>, transform_indices = @transform_3, window_bounds = array<i64: 256, 256>}, {pipeline_mode = #tpu.pipeline_mode<synchronous>, transform_indices = @transform_4, window_bounds = array<i64: 256, 1>}, {pipeline_mode = #tpu.pipeline_mode<synchronous>, transform_indices = @transform_5, window_bounds = array<i64: 1, 256>}, {pipeline_mode = #tpu.pipeline_mode<synchronous>, transform_indices = @transform_6, window_bounds = array<i64: 1, 1>}, {transform_indices = @transform_7, window_bounds = array<i64: 1, 256>}]} {
    %c0 = arith.constant 0 : index
    %c0_0 = arith.constant 0 : index
    %0 = vector.load %arg1[%c0, %c0_0] : memref<4x256xbf16, #tpu.memory_space<vmem>>, vector<4x256xbf16>
    %1 = arith.extf %0 : vector<4x256xbf16> to vector<4x256xf32>
    %c0_1 = arith.constant 0 : index
    %c0_2 = arith.constant 0 : index
    %2 = vector.load %arg2[%c0_1, %c0_2] : memref<256x4xbf16, #tpu.memory_space<vmem>>, vector<256x4xbf16>
    %3 = arith.extf %2 : vector<256x4xbf16> to vector<256x4xf32>
    %c0_3 = arith.constant 0 : index
    %c0_4 = arith.constant 0 : index
    %4 = vector.load %arg3[%c0_3, %c0_4] : memref<256x1xf32, #tpu.memory_space<vmem>>, vector<256x1xf32>
    %5 = vector.extract_strided_slice %3 {offsets = [0, 0], sizes = [256, 1], strides = [1, 1]} : vector<256x4xf32> to vector<256x1xf32>
    %6 = vector.extract_strided_slice %1 {offsets = [0, 0], sizes = [1, 256], strides = [1, 1]} : vector<4x256xf32> to vector<1x256xf32>
    %7 = vector.broadcast %5 : vector<256x1xf32> to vector<256x256xf32>
    %8 = vector.broadcast %6 : vector<1x256xf32> to vector<256x256xf32>
    %9 = arith.mulf %7, %8 : vector<256x256xf32>
    %10 = vector.broadcast %4 : vector<256x1xf32> to vector<256x256xf32>
    %11 = arith.addf %10, %9 : vector<256x256xf32>
    %12 = vector.extract_strided_slice %3 {offsets = [0, 1], sizes = [256, 1], strides = [1, 1]} : vector<256x4xf32> to vector<256x1xf32>
    %13 = vector.extract_strided_slice %1 {offsets = [1, 0], sizes = [1, 256], strides = [1, 1]} : vector<4x256xf32> to vector<1x256xf32>
    %14 = vector.broadcast %12 : vector<256x1xf32> to vector<256x256xf32>
    %15 = vector.broadcast %13 : vector<1x256xf32> to vector<256x256xf32>
    %16 = arith.mulf %14, %15 : vector<256x256xf32>
    %17 = arith.addf %11, %16 : vector<256x256xf32>
    %18 = vector.extract_strided_slice %3 {offsets = [0, 2], sizes = [256, 1], strides = [1, 1]} : vector<256x4xf32> to vector<256x1xf32>
    %19 = vector.extract_strided_slice %1 {offsets = [2, 0], sizes = [1, 256], strides = [1, 1]} : vector<4x256xf32> to vector<1x256xf32>
    %20 = vector.broadcast %18 : vector<256x1xf32> to vector<256x256xf32>
    %21 = vector.broadcast %19 : vector<1x256xf32> to vector<256x256xf32>
    %22 = arith.mulf %20, %21 : vector<256x256xf32>
    %23 = arith.addf %17, %22 : vector<256x256xf32>
    %24 = vector.extract_strided_slice %3 {offsets = [0, 3], sizes = [256, 1], strides = [1, 1]} : vector<256x4xf32> to vector<256x1xf32>
    %25 = vector.extract_strided_slice %1 {offsets = [3, 0], sizes = [1, 256], strides = [1, 1]} : vector<4x256xf32> to vector<1x256xf32>
    %26 = vector.broadcast %24 : vector<256x1xf32> to vector<256x256xf32>
    %27 = vector.broadcast %25 : vector<1x256xf32> to vector<256x256xf32>
    %28 = arith.mulf %26, %27 : vector<256x256xf32>
    %29 = arith.addf %23, %28 : vector<256x256xf32>
    %cst = arith.constant 0.000000e+00 : f32
    %30 = vector.broadcast %cst : f32 to vector<256x256xf32>
    %31 = arith.maximumf %29, %30 : vector<256x256xf32>
    %c0_5 = arith.constant 0 : index
    %c0_6 = arith.constant 0 : index
    %32 = vector.load %arg4[%c0_5, %c0_6] : memref<256x256xbf16, #tpu.memory_space<vmem>>, vector<256x256xbf16>
    %33 = arith.truncf %31 : vector<256x256xf32> to vector<256x256xbf16>
    %cst_7 = arith.constant dense<0.000000e+00> : vector<256x256xf32>
    %34 = tpu.matmul %32, %33, %cst_7 {dimension_numbers = #tpu.dot_dimension_numbers<[1], [0], [0], [1], [0, 0, 1, 1], [], []>} : vector<256x256xbf16>, vector<256x256xbf16>, vector<256x256xf32> -> vector<256x256xf32>
    %c0_8 = arith.constant 0 : index
    %c0_9 = arith.constant 0 : index
    %35 = vector.load %arg5[%c0_8, %c0_9] : memref<256x1xf32, #tpu.memory_space<vmem>>, vector<256x1xf32>
    %36 = vector.broadcast %35 : vector<256x1xf32> to vector<256x256xf32>
    %37 = arith.addf %34, %36 : vector<256x256xf32>
    %cst_10 = arith.constant 0.000000e+00 : f32
    %38 = vector.broadcast %cst_10 : f32 to vector<256x256xf32>
    %39 = arith.maximumf %37, %38 : vector<256x256xf32>
    %c0_11 = arith.constant 0 : index
    %c0_12 = arith.constant 0 : index
    %40 = vector.load %arg6[%c0_11, %c0_12] : memref<1x256xbf16, #tpu.memory_space<vmem>>, vector<1x256xbf16>
    %41 = arith.truncf %39 : vector<256x256xf32> to vector<256x256xbf16>
    %cst_13 = arith.constant dense<0.000000e+00> : vector<1x256xf32>
    %42 = tpu.matmul %40, %41, %cst_13 {dimension_numbers = #tpu.dot_dimension_numbers<[1], [0], [0], [1], [0, 0, 1, 1], [], []>} : vector<1x256xbf16>, vector<256x256xbf16>, vector<1x256xf32> -> vector<1x256xf32>
    %c0_14 = arith.constant 0 : index
    %c0_15 = arith.constant 0 : index
    %43 = vector.load %arg7[%c0_14, %c0_15] : memref<1x1xf32, #tpu.memory_space<vmem>>, vector<1x1xf32>
    %44 = vector.broadcast %43 : vector<1x1xf32> to vector<1x256xf32>
    %45 = arith.addf %42, %44 : vector<1x256xf32>
    %c0_16 = arith.constant 0 : index
    %c0_17 = arith.constant 0 : index
    %46 = vector.load %arg8[%c0_16, %c0_17] : memref<1x256xf32, #tpu.memory_space<vmem>>, vector<1x256xf32>
    tpu.vector_store %arg8[%c0_16, %c0_17], %45 {strides = array<i32>} : memref<1x256xf32, #tpu.memory_space<vmem>>, vector<1x256xf32>,
    return
  }
  func.func @transform_0(%arg0: i32) -> (i32, i32) {
    %c0_i32 = arith.constant 0 : i32
    %c0_i32_0 = arith.constant 0 : i32
    return %c0_i32, %arg0 : i32, i32
  }
  func.func @transform_1(%arg0: i32) -> (i32, i32) {
    %c0_i32 = arith.constant 0 : i32
    %c0_i32_0 = arith.constant 0 : i32
    %c0_i32_1 = arith.constant 0 : i32
    return %c0_i32, %c0_i32_0 : i32, i32
  }
  func.func @transform_2(%arg0: i32) -> (i32, i32) {
    %c0_i32 = arith.constant 0 : i32
    %c0_i32_0 = arith.constant 0 : i32
    %c0_i32_1 = arith.constant 0 : i32
    return %c0_i32, %c0_i32_0 : i32, i32
  }
  func.func @transform_3(%arg0: i32) -> (i32, i32) {
    %c0_i32 = arith.constant 0 : i32
    %c0_i32_0 = arith.constant 0 : i32
    %c0_i32_1 = arith.constant 0 : i32
    return %c0_i32, %c0_i32_0 : i32, i32
  }
  func.func @transform_4(%arg0: i32) -> (i32, i32) {
    %c0_i32 = arith.constant 0 : i32
    %c0_i32_0 = arith.constant 0 : i32
    %c0_i32_1 = arith.constant 0 : i32
    return %c0_i32, %c0_i32_0 : i32, i32
  }
  func.func @transform_5(%arg0: i32) -> (i32, i32) {
    %c0_i32 = arith.constant 0 : i32
    %c0_i32_0 = arith.constant 0 : i32
    %c0_i32_1 = arith.constant 0 : i32
    return %c0_i32, %c0_i32_0 : i32, i32
  }
  func.func @transform_6(%arg0: i32) -> (i32, i32) {
    %c0_i32 = arith.constant 0 : i32
    %c0_i32_0 = arith.constant 0 : i32
    %c0_i32_1 = arith.constant 0 : i32
    return %c0_i32, %c0_i32_0 : i32, i32
  }
  func.func @transform_7(%arg0: i32) -> (i32, i32) {
    %c0_i32 = arith.constant 0 : i32
    %c0_i32_0 = arith.constant 0 : i32
    return %c0_i32, %arg0 : i32, i32
  }
}

</mosaic_0001>

<llo_original>
// kernel: vnetwork_forward.1
$region0: #{vnetwork_forward.1}
  #allocation0 [shape = 'u32[]', space=smem, size = 0x4, offset = 0x4, fixed_abs, tag = 'smem constant byte address 0x4 - core index']
  #allocation1 [shape = 'u32[144,128]{1,0:T(1,128)}', space=vmem, size = 0x12000, scoped, tag = 'internal scratch']
  #allocation2 [shape = 'f32[1,1]{1,0:T(1,128)S(1)}', space=vmem, size = 0x200, scoped, tag = 'scoped memory for vnetwork_forward.1']
  %s0 = inlined_call_operand.vmem [shape: bf16[4,256], index: 0, kind: input, shape index: {}]
  %s1 = inlined_call_operand.vmem [shape: bf16[256,4], index: 1, kind: input, shape index: {}]
  %s2 = inlined_call_operand.vmem [shape: f32[256,1], index: 2, kind: input, shape index: {}]
  %s3 = inlined_call_operand.vmem [shape: bf16[256,256], index: 3, kind: input, shape index: {}]
  %s4 = inlined_call_operand.vmem [shape: f32[256,1], index: 4, kind: input, shape index: {}]
  %s5 = inlined_call_operand.vmem [shape: bf16[1,256], index: 5, kind: input, shape index: {}]
  %s6 = inlined_call_operand.<no memory space> [shape: f32[1,1], index: 6, kind: input, shape index: {}]
  %s7 = inlined_call_operand.vmem [shape: f32[1,256], index: 7, kind: output, shape index: {}]
  %s8 = sld [smem:[#allocation0]]
  $region38: #{vnetwork_forward.1} parent=0
    _
  %s10 = ssub.s32 1, %s8
  %s11 = scalar_select 0, %s10, %s8
  %v12 = vstv %s6
  %13 = vst [vmem:[#allocation2] sm:$0x1] %v12
  // Predicated region
  $region2: #{vnetwork_forward.1} parent=0 // pred_check
    _
  $region3: #{vnetwork_forward.1} parent=0 // pred_check_branch
    %15 = sbr.rel (0) target = $region5
  $region4: #{vnetwork_forward.1} parent=0 // pred_region
    _
  $region5: #{vnetwork_forward.1} parent=0 // pred_fallthru
    _
  // Predicated region
  $region6: #{vnetwork_forward.1} parent=0 // pred_check
    _
  $region7: #{vnetwork_forward.1} parent=0 // pred_check_branch
    %17 = sbr.rel (0) target = $region9
  $region8: #{vnetwork_forward.1} parent=0 // pred_region
    _
  $region9: #{vnetwork_forward.1} parent=0 // pred_fallthru
    _
  // Predicated region
  $region10: #{vnetwork_forward.1} parent=0 // pred_check
    _
  $region11: #{vnetwork_forward.1} parent=0 // pred_check_branch
    %19 = sbr.rel (0) target = $region13
  $region12: #{vnetwork_forward.1} parent=0 // pred_region
    _
  $region13: #{vnetwork_forward.1} parent=0 // pred_fallthru
    _
  // Predicated region
  $region14: #{vnetwork_forward.1} parent=0 // pred_check
    _
  $region15: #{vnetwork_forward.1} parent=0 // pred_check_branch
    %21 = sbr.rel (0) target = $region17
  $region16: #{vnetwork_forward.1} parent=0 // pred_region
    _
  $region17: #{vnetwork_forward.1} parent=0 // pred_fallthru
    _
  // Predicated region
  $region18: #{vnetwork_forward.1} parent=0 // pred_check
    _
  $region19: #{vnetwork_forward.1} parent=0 // pred_check_branch
    %23 = sbr.rel (0) target = $region21
  $region20: #{vnetwork_forward.1} parent=0 // pred_region
    _
  $region21: #{vnetwork_forward.1} parent=0 // pred_fallthru
    _
  // Predicated region
  $region22: #{vnetwork_forward.1} parent=0 // pred_check
    _
  $region23: #{vnetwork_forward.1} parent=0 // pred_check_branch
    %25 = sbr.rel (0) target = $region25
  $region24: #{vnetwork_forward.1} parent=0 // pred_region
    _
  $region25: #{vnetwork_forward.1} parent=0 // pred_fallthru
    _
  // Predicated region
  $region26: #{vnetwork_forward.1} parent=0 // pred_check
    _
  $region27: #{vnetwork_forward.1} parent=0 // pred_check_branch
    %27 = sbr.rel (0) target = $region29
  $region28: #{vnetwork_forward.1} parent=0 // pred_region
    _
  $region29: #{vnetwork_forward.1} parent=0 // pred_fallthru
    _
  %v28 = vld [vmem:[%s0] sm:$0xf]
  %v29 = vunpack.c.l.bf16 %v28
  %v30 = vld [vmem:[%s1] sm:$0xf]
  %v31 = vld [vmem:[%s1 + $0x4] sm:$0xf]
  %v32 = vld [vmem:[%s1 + $0x8] sm:$0xf]
  %v33 = vld [vmem:[%s1 + $0xc] sm:$0xf]
  %v34 = vld [vmem:[%s1 + $0x10] sm:$0xf]
  %v35 = vld [vmem:[%s1 + $0x14] sm:$0xf]
  %v36 = vld [vmem:[%s1 + $0x18] sm:$0xf]
  %v37 = vld [vmem:[%s1 + $0x1c] sm:$0xf]
  %v38 = vld [vmem:[%s1 + $0x20] sm:$0xf]
  %v39 = vld [vmem:[%s1 + $0x24] sm:$0xf]
  %v40 = vld [vmem:[%s1 + $0x28] sm:$0xf]
  %v41 = vld [vmem:[%s1 + $0x2c] sm:$0xf]
  %v42 = vld [vmem:[%s1 + $0x30] sm:$0xf]
  %v43 = vld [vmem:[%s1 + $0x34] sm:$0xf]
  %v44 = vld [vmem:[%s1 + $0x38] sm:$0xf]
  %v45 = vld [vmem:[%s1 + $0x3c] sm:$0xf]
  %v46 = vld [vmem:[%s1 + $0x40] sm:$0xf]
  %v47 = vld [vmem:[%s1 + $0x44] sm:$0xf]
  %v48 = vld [vmem:[%s1 + $0x48] sm:$0xf]
  %v49 = vld [vmem:[%s1 + $0x4c] sm:$0xf]
  %v50 = vld [vmem:[%s1 + $0x50] sm:$0xf]
  %v51 = vld [vmem:[%s1 + $0x54] sm:$0xf]
  %v52 = vld [vmem:[%s1 + $0x58] sm:$0xf]
  %v53 = vld [vmem:[%s1 + $0x5c] sm:$0xf]
  %v54 = vld [vmem:[%s1 + $0x60] sm:$0xf]
  %v55 = vld [vmem:[%s1 + $0x64] sm:$0xf]
  %v56 = vld [vmem:[%s1 + $0x68] sm:$0xf]
  %v57 = vld [vmem:[%s1 + $0x6c] sm:$0xf]
  %v58 = vld [vmem:[%s1 + $0x70] sm:$0xf]
  %v59 = vld [vmem:[%s1 + $0x74] sm:$0xf]
  %v60 = vld [vmem:[%s1 + $0x78] sm:$0xf]
  %v61 = vld [vmem:[%s1 + $0x7c] sm:$0xf]
  %v62 = vunpack.c.l.bf16 %v30
  %v63 = vunpack.c.l.bf16 %v31
  %v64 = vunpack.c.l.bf16 %v32
  %v65 = vunpack.c.l.bf16 %v33
  %v66 = vunpack.c.l.bf16 %v34
  %v67 = vunpack.c.l.bf16 %v35
  %v68 = vunpack.c.l.bf16 %v36
  %v69 = vunpack.c.l.bf16 %v37
  %v70 = vunpack.c.l.bf16 %v38
  %v71 = vunpack.c.l.bf16 %v39
  %v72 = vunpack.c.l.bf16 %v40
  %v73 = vunpack.c.l.bf16 %v41
  %v74 = vunpack.c.l.bf16 %v42
  %v75 = vunpack.c.l.bf16 %v43
  %v76 = vunpack.c.l.bf16 %v44
  %v77 = vunpack.c.l.bf16 %v45
  %v78 = vunpack.c.l.bf16 %v46
  %v79 = vunpack.c.l.bf16 %v47
  %v80 = vunpack.c.l.bf16 %v48
  %v81 = vunpack.c.l.bf16 %v49
  %v82 = vunpack.c.l.bf16 %v50
  %v83 = vunpack.c.l.bf16 %v51
  %v84 = vunpack.c.l.bf16 %v52
  %v85 = vunpack.c.l.bf16 %v53
  %v86 = vunpack.c.l.bf16 %v54
  %v87 = vunpack.c.l.bf16 %v55
  %v88 = vunpack.c.l.bf16 %v56
  %v89 = vunpack.c.l.bf16 %v57
  %v90 = vunpack.c.l.bf16 %v58
  %v91 = vunpack.c.l.bf16 %v59
  %v92 = vunpack.c.l.bf16 %v60
  %v93 = vunpack.c.l.bf16 %v61
  %v94 = vld [vmem:[%s2] sm:$0xff]
  %v95 = vld [vmem:[%s2 + $0x8] sm:$0xff]
  %v96 = vld [vmem:[%s2 + $0x10] sm:$0xff]
  %v97 = vld [vmem:[%s2 + $0x18] sm:$0xff]
  %v98 = vld [vmem:[%s2 + $0x20] sm:$0xff]
  %v99 = vld [vmem:[%s2 + $0x28] sm:$0xff]
  %v100 = vld [vmem:[%s2 + $0x30] sm:$0xff]
  %v101 = vld [vmem:[%s2 + $0x38] sm:$0xff]
  %v102 = vld [vmem:[%s2 + $0x40] sm:$0xff]
  %v103 = vld [vmem:[%s2 + $0x48] sm:$0xff]
  %v104 = vld [vmem:[%s2 + $0x50] sm:$0xff]
  %v105 = vld [vmem:[%s2 + $0x58] sm:$0xff]
  %v106 = vld [vmem:[%s2 + $0x60] sm:$0xff]
  %v107 = vld [vmem:[%s2 + $0x68] sm:$0xff]
  %v108 = vld [vmem:[%s2 + $0x70] sm:$0xff]
  %v109 = vld [vmem:[%s2 + $0x78] sm:$0xff]
  %v110 = vld [vmem:[%s2 + $0x80] sm:$0xff]
  %v111 = vld [vmem:[%s2 + $0x88] sm:$0xff]
  %v112 = vld [vmem:[%s2 + $0x90] sm:$0xff]
  %v113 = vld [vmem:[%s2 + $0x98] sm:$0xff]
  %v114 = vld [vmem:[%s2 + $0xa0] sm:$0xff]
  %v115 = vld [vmem:[%s2 + $0xa8] sm:$0xff]
  %v116 = vld [vmem:[%s2 + $0xb0] sm:$0xff]
  %v117 = vld [vmem:[%s2 + $0xb8] sm:$0xff]
  %v118 = vld [vmem:[%s2 + $0xc0] sm:$0xff]
  %v119 = vld [vmem:[%s2 + $0xc8] sm:$0xff]
  %v120 = vld [vmem:[%s2 + $0xd0] sm:$0xff]
  %v121 = vld [vmem:[%s2 + $0xd8] sm:$0xff]
  %v122 = vld [vmem:[%s2 + $0xe0] sm:$0xff]
  %v123 = vld [vmem:[%s2 + $0xe8] sm:$0xff]
  %v124 = vld [vmem:[%s2 + $0xf0] sm:$0xff]
  %v125 = vld [vmem:[%s2 + $0xf8] sm:$0xff]
  %127 = vset.pattern.permute.xlu0 0
  %128 = vperm.xlu0 %127, %v62
  %v129 = vpop.permute.xlu0 %128
  %132 = vset.pattern.permute.xlu0 0
  %133 = vperm.xlu0 %132, %v63
  %v134 = vpop.permute.xlu0 %133
  %137 = vset.pattern.permute.xlu0 0
  %138 = vperm.xlu0 %137, %v64
  %v139 = vpop.permute.xlu0 %138
  %142 = vset.pattern.permute.xlu0 0
  %143 = vperm.xlu0 %142, %v65
  %v144 = vpop.permute.xlu0 %143
  %147 = vset.pattern.permute.xlu0 0
  %148 = vperm.xlu0 %147, %v66
  %v149 = vpop.permute.xlu0 %148
  %152 = vset.pattern.permute.xlu0 0
  %153 = vperm.xlu0 %152, %v67
  %v154 = vpop.permute.xlu0 %153
  %157 = vset.pattern.permute.xlu0 0
  %158 = vperm.xlu0 %157, %v68
  %v159 = vpop.permute.xlu0 %158
  %162 = vset.pattern.permute.xlu0 0
  %163 = vperm.xlu0 %162, %v69
  %v164 = vpop.permute.xlu0 %163
  %167 = vset.pattern.permute.xlu0 0
  %168 = vperm.xlu0 %167, %v70
  %v169 = vpop.permute.xlu0 %168
  %172 = vset.pattern.permute.xlu0 0
  %173 = vperm.xlu0 %172, %v71
  %v174 = vpop.permute.xlu0 %173
  %177 = vset.pattern.permute.xlu0 0
  %178 = vperm.xlu0 %177, %v72
  %v179 = vpop.permute.xlu0 %178
  %182 = vset.pattern.permute.xlu0 0
  %183 = vperm.xlu0 %182, %v73
  %v184 = vpop.permute.xlu0 %183
  %187 = vset.pattern.permute.xlu0 0
  %188 = vperm.xlu0 %187, %v74
  %v189 = vpop.permute.xlu0 %188
  %192 = vset.pattern.permute.xlu0 0
  %193 = vperm.xlu0 %192, %v75
  %v194 = vpop.permute.xlu0 %193
  %197 = vset.pattern.permute.xlu0 0
  %198 = vperm.xlu0 %197, %v76
  %v199 = vpop.permute.xlu0 %198
  %202 = vset.pattern.permute.xlu0 0
  %203 = vperm.xlu0 %202, %v77
  %v204 = vpop.permute.xlu0 %203
  %207 = vset.pattern.permute.xlu0 0
  %208 = vperm.xlu0 %207, %v78
  %v209 = vpop.permute.xlu0 %208
  %212 = vset.pattern.permute.xlu0 0
  %213 = vperm.xlu0 %212, %v79
  %v214 = vpop.permute.xlu0 %213
  %217 = vset.pattern.permute.xlu0 0
  %218 = vperm.xlu0 %217, %v80
  %v219 = vpop.permute.xlu0 %218
  %222 = vset.pattern.permute.xlu0 0
  %223 = vperm.xlu0 %222, %v81
  %v224 = vpop.permute.xlu0 %223
  %227 = vset.pattern.permute.xlu0 0
  %228 = vperm.xlu0 %227, %v82
  %v229 = vpop.permute.xlu0 %228
  %232 = vset.pattern.permute.xlu0 0
  %233 = vperm.xlu0 %232, %v83
  %v234 = vpop.permute.xlu0 %233
  %237 = vset.pattern.permute.xlu0 0
  %238 = vperm.xlu0 %237, %v84
  %v239 = vpop.permute.xlu0 %238
  %242 = vset.pattern.permute.xlu0 0
  %243 = vperm.xlu0 %242, %v85
  %v244 = vpop.permute.xlu0 %243
  %247 = vset.pattern.permute.xlu0 0
  %248 = vperm.xlu0 %247, %v86
  %v249 = vpop.permute.xlu0 %248
  %252 = vset.pattern.permute.xlu0 0
  %253 = vperm.xlu0 %252, %v87
  %v254 = vpop.permute.xlu0 %253
  %257 = vset.pattern.permute.xlu0 0
  %258 = vperm.xlu0 %257, %v88
  %v259 = vpop.permute.xlu0 %258
  %262 = vset.pattern.permute.xlu0 0
  %263 = vperm.xlu0 %262, %v89
  %v264 = vpop.permute.xlu0 %263
  %267 = vset.pattern.permute.xlu0 0
  %268 = vperm.xlu0 %267, %v90
  %v269 = vpop.permute.xlu0 %268
  %272 = vset.pattern.permute.xlu0 0
  %273 = vperm.xlu0 %272, %v91
  %v274 = vpop.permute.xlu0 %273
  %277 = vset.pattern.permute.xlu0 0
  %278 = vperm.xlu0 %277, %v92
  %v279 = vpop.permute.xlu0 %278
  %282 = vset.pattern.permute.xlu0 0
  %283 = vperm.xlu0 %282, %v93
  %v284 = vpop.permute.xlu0 %283
  %v287 = vlaneseq
  %v288 = vshrl.u32 %v287, 7
  %v289 = vsub.s32 0, %v288
  %v290 = vrot.slane %v29, %v289
  %v291 = vlaneseq
  %v292 = vshrl.u32 %v291, 7
  %v293 = vsub.s32 4, %v292
  %v294 = vrot.slane %v29, %v293
  %v297 = vlaneseq
  %v298 = vshrl.u32 %v297, 7
  %v299 = vsub.s32 0, %v298
  %v300 = vrot.slane %v290, %v299
  %v301 = vlaneseq
  %v302 = vshrl.u32 %v301, 7
  %v303 = vsub.s32 0, %v302
  %v304 = vrot.slane %v294, %v303
  %v305 = vmul.f32 %v129, %v300
  %v306 = vmul.f32 %v129, %v304
  %v307 = vmul.f32 %v134, %v300
  %v308 = vmul.f32 %v134, %v304
  %v309 = vmul.f32 %v139, %v300
  %v310 = vmul.f32 %v139, %v304
  %v311 = vmul.f32 %v144, %v300
  %v312 = vmul.f32 %v144, %v304
  %v313 = vmul.f32 %v149, %v300
  %v314 = vmul.f32 %v149, %v304
  %v315 = vmul.f32 %v154, %v300
  %v316 = vmul.f32 %v154, %v304
  %v317 = vmul.f32 %v159, %v300
  %v318 = vmul.f32 %v159, %v304
  %v319 = vmul.f32 %v164, %v300
  %v320 = vmul.f32 %v164, %v304
  %v321 = vmul.f32 %v169, %v300
  %v322 = vmul.f32 %v169, %v304
  %v323 = vmul.f32 %v174, %v300
  %v324 = vmul.f32 %v174, %v304
  %v325 = vmul.f32 %v179, %v300
  %v326 = vmul.f32 %v179, %v304
  %v327 = vmul.f32 %v184, %v300
  %v328 = vmul.f32 %v184, %v304
  %v329 = vmul.f32 %v189, %v300
  %v330 = vmul.f32 %v189, %v304
  %v331 = vmul.f32 %v194, %v300
  %v332 = vmul.f32 %v194, %v304
  %v333 = vmul.f32 %v199, %v300
  %v334 = vmul.f32 %v199, %v304
  %v335 = vmul.f32 %v204, %v300
  %v336 = vmul.f32 %v204, %v304
  %v337 = vmul.f32 %v209, %v300
  %v338 = vmul.f32 %v209, %v304
  %v339 = vmul.f32 %v214, %v300
  %v340 = vmul.f32 %v214, %v304
  %v341 = vmul.f32 %v219, %v300
  %v342 = vmul.f32 %v219, %v304
  %v343 = vmul.f32 %v224, %v300
  %v344 = vmul.f32 %v224, %v304
  %v345 = vmul.f32 %v229, %v300
  %v346 = vmul.f32 %v229, %v304
  %v347 = vmul.f32 %v234, %v300
  %v348 = vmul.f32 %v234, %v304
  %v349 = vmul.f32 %v239, %v300
  %v350 = vmul.f32 %v239, %v304
  %v351 = vmul.f32 %v244, %v300
  %v352 = vmul.f32 %v244, %v304
  %v353 = vmul.f32 %v249, %v300
  %v354 = vmul.f32 %v249, %v304
  %v355 = vmul.f32 %v254, %v300
  %v356 = vmul.f32 %v254, %v304
  %v357 = vmul.f32 %v259, %v300
  %v358 = vmul.f32 %v259, %v304
  %v359 = vmul.f32 %v264, %v300
  %v360 = vmul.f32 %v264, %v304
  %v361 = vmul.f32 %v269, %v300
  %v362 = vmul.f32 %v269, %v304
  %v363 = vmul.f32 %v274, %v300
  %v364 = vmul.f32 %v274, %v304
  %v365 = vmul.f32 %v279, %v300
  %v366 = vmul.f32 %v279, %v304
  %v367 = vmul.f32 %v284, %v300
  %v368 = vmul.f32 %v284, %v304
  %370 = vset.pattern.permute.xlu0 0
  %371 = vperm.xlu0 %370, %v94
  %v372 = vpop.permute.xlu0 %371
  %375 = vset.pattern.permute.xlu0 0
  %376 = vperm.xlu0 %375, %v95
  %v377 = vpop.permute.xlu0 %376
  %380 = vset.pattern.permute.xlu0 0
  %381 = vperm.xlu0 %380, %v96
  %v382 = vpop.permute.xlu0 %381
  %385 = vset.pattern.permute.xlu0 0
  %386 = vperm.xlu0 %385, %v97
  %v387 = vpop.permute.xlu0 %386
  %390 = vset.pattern.permute.xlu0 0
  %391 = vperm.xlu0 %390, %v98
  %v392 = vpop.permute.xlu0 %391
  %395 = vset.pattern.permute.xlu0 0
  %396 = vperm.xlu0 %395, %v99
  %v397 = vpop.permute.xlu0 %396
  %400 = vset.pattern.permute.xlu0 0
  %401 = vperm.xlu0 %400, %v100
  %v402 = vpop.permute.xlu0 %401
  %405 = vset.pattern.permute.xlu0 0
  %406 = vperm.xlu0 %405, %v101
  %v407 = vpop.permute.xlu0 %406
  %410 = vset.pattern.permute.xlu0 0
  %411 = vperm.xlu0 %410, %v102
  %v412 = vpop.permute.xlu0 %411
  %415 = vset.pattern.permute.xlu0 0
  %416 = vperm.xlu0 %415, %v103
  %v417 = vpop.permute.xlu0 %416
  %420 = vset.pattern.permute.xlu0 0
  %421 = vperm.xlu0 %420, %v104
  %v422 = vpop.permute.xlu0 %421
  %425 = vset.pattern.permute.xlu0 0
  %426 = vperm.xlu0 %425, %v105
  %v427 = vpop.permute.xlu0 %426
  %430 = vset.pattern.permute.xlu0 0
  %431 = vperm.xlu0 %430, %v106
  %v432 = vpop.permute.xlu0 %431
  %435 = vset.pattern.permute.xlu0 0
  %436 = vperm.xlu0 %435, %v107
  %v437 = vpop.permute.xlu0 %436
  %440 = vset.pattern.permute.xlu0 0
  %441 = vperm.xlu0 %440, %v108
  %v442 = vpop.permute.xlu0 %441
  %445 = vset.pattern.permute.xlu0 0
  %446 = vperm.xlu0 %445, %v109
  %v447 = vpop.permute.xlu0 %446
  %450 = vset.pattern.permute.xlu0 0
  %451 = vperm.xlu0 %450, %v110
  %v452 = vpop.permute.xlu0 %451
  %455 = vset.pattern.permute.xlu0 0
  %456 = vperm.xlu0 %455, %v111
  %v457 = vpop.permute.xlu0 %456
  %460 = vset.pattern.permute.xlu0 0
  %461 = vperm.xlu0 %460, %v112
  %v462 = vpop.permute.xlu0 %461
  %465 = vset.pattern.permute.xlu0 0
  %466 = vperm.xlu0 %465, %v113
  %v467 = vpop.permute.xlu0 %466
  %470 = vset.pattern.permute.xlu0 0
  %471 = vperm.xlu0 %470, %v114
  %v472 = vpop.permute.xlu0 %471
  %475 = vset.pattern.permute.xlu0 0
  %476 = vperm.xlu0 %475, %v115
  %v477 = vpop.permute.xlu0 %476
  %480 = vset.pattern.permute.xlu0 0
  %481 = vperm.xlu0 %480, %v116
  %v482 = vpop.permute.xlu0 %481
  %485 = vset.pattern.permute.xlu0 0
  %486 = vperm.xlu0 %485, %v117
  %v487 = vpop.permute.xlu0 %486
  %490 = vset.pattern.permute.xlu0 0
  %491 = vperm.xlu0 %490, %v118
  %v492 = vpop.permute.xlu0 %491
  %495 = vset.pattern.permute.xlu0 0
  %496 = vperm.xlu0 %495, %v119
  %v497 = vpop.permute.xlu0 %496
  %500 = vset.pattern.permute.xlu0 0
  %501 = vperm.xlu0 %500, %v120
  %v502 = vpop.permute.xlu0 %501
  %505 = vset.pattern.permute.xlu0 0
  %506 = vperm.xlu0 %505, %v121
  %v507 = vpop.permute.xlu0 %506
  %510 = vset.pattern.permute.xlu0 0
  %511 = vperm.xlu0 %510, %v122
  %v512 = vpop.permute.xlu0 %511
  %515 = vset.pattern.permute.xlu0 0
  %516 = vperm.xlu0 %515, %v123
  %v517 = vpop.permute.xlu0 %516
  %520 = vset.pattern.permute.xlu0 0
  %521 = vperm.xlu0 %520, %v124
  %v522 = vpop.permute.xlu0 %521
  %525 = vset.pattern.permute.xlu0 0
  %526 = vperm.xlu0 %525, %v125
  %v527 = vpop.permute.xlu0 %526
  %v529 = vadd.f32 %v372, %v305
  %v530 = vadd.f32 %v372, %v306
  %v531 = vadd.f32 %v377, %v307
  %v532 = vadd.f32 %v377, %v308
  %v533 = vadd.f32 %v382, %v309
  %v534 = vadd.f32 %v382, %v310
  %v535 = vadd.f32 %v387, %v311
  %v536 = vadd.f32 %v387, %v312
  %v537 = vadd.f32 %v392, %v313
  %v538 = vadd.f32 %v392, %v314
  %v539 = vadd.f32 %v397, %v315
  %v540 = vadd.f32 %v397, %v316
  %v541 = vadd.f32 %v402, %v317
  %v542 = vadd.f32 %v402, %v318
  %v543 = vadd.f32 %v407, %v319
  %v544 = vadd.f32 %v407, %v320
  %v545 = vadd.f32 %v412, %v321
  %v546 = vadd.f32 %v412, %v322
  %v547 = vadd.f32 %v417, %v323
  %v548 = vadd.f32 %v417, %v324
  %v549 = vadd.f32 %v422, %v325
  %v550 = vadd.f32 %v422, %v326
  %v551 = vadd.f32 %v427, %v327
  %v552 = vadd.f32 %v427, %v328
  %v553 = vadd.f32 %v432, %v329
  %v554 = vadd.f32 %v432, %v330
  %v555 = vadd.f32 %v437, %v331
  %v556 = vadd.f32 %v437, %v332
  %v557 = vadd.f32 %v442, %v333
  %v558 = vadd.f32 %v442, %v334
  %v559 = vadd.f32 %v447, %v335
  %v560 = vadd.f32 %v447, %v336
  %v561 = vadd.f32 %v452, %v337
  %v562 = vadd.f32 %v452, %v338
  %v563 = vadd.f32 %v457, %v339
  %v564 = vadd.f32 %v457, %v340
  %v565 = vadd.f32 %v462, %v341
  %v566 = vadd.f32 %v462, %v342
  %v567 = vadd.f32 %v467, %v343
  %v568 = vadd.f32 %v467, %v344
  %v569 = vadd.f32 %v472, %v345
  %v570 = vadd.f32 %v472, %v346
  %v571 = vadd.f32 %v477, %v347
  %v572 = vadd.f32 %v477, %v348
  %v573 = vadd.f32 %v482, %v349
  %v574 = vadd.f32 %v482, %v350
  %v575 = vadd.f32 %v487, %v351
  %v576 = vadd.f32 %v487, %v352
  %v577 = vadd.f32 %v492, %v353
  %v578 = vadd.f32 %v492, %v354
  %v579 = vadd.f32 %v497, %v355
  %v580 = vadd.f32 %v497, %v356
  %v581 = vadd.f32 %v502, %v357
  %v582 = vadd.f32 %v502, %v358
  %v583 = vadd.f32 %v507, %v359
  %v584 = vadd.f32 %v507, %v360
  %v585 = vadd.f32 %v512, %v361
  %v586 = vadd.f32 %v512, %v362
  %v587 = vadd.f32 %v517, %v363
  %v588 = vadd.f32 %v517, %v364
  %v589 = vadd.f32 %v522, %v365
  %v590 = vadd.f32 %v522, %v366
  %v591 = vadd.f32 %v527, %v367
  %v592 = vadd.f32 %v527, %v368
  %593 = vset.pattern.permute.xlu0 1
  %594 = vperm.xlu0 %593, %v62
  %v595 = vpop.permute.xlu0 %594
  %597 = vset.pattern.permute.xlu0 1
  %598 = vperm.xlu0 %597, %v63
  %v599 = vpop.permute.xlu0 %598
  %601 = vset.pattern.permute.xlu0 1
  %602 = vperm.xlu0 %601, %v64
  %v603 = vpop.permute.xlu0 %602
  %605 = vset.pattern.permute.xlu0 1
  %606 = vperm.xlu0 %605, %v65
  %v607 = vpop.permute.xlu0 %606
  %609 = vset.pattern.permute.xlu0 1
  %610 = vperm.xlu0 %609, %v66
  %v611 = vpop.permute.xlu0 %610
  %613 = vset.pattern.permute.xlu0 1
  %614 = vperm.xlu0 %613, %v67
  %v615 = vpop.permute.xlu0 %614
  %617 = vset.pattern.permute.xlu0 1
  %618 = vperm.xlu0 %617, %v68
  %v619 = vpop.permute.xlu0 %618
  %621 = vset.pattern.permute.xlu0 1
  %622 = vperm.xlu0 %621, %v69
  %v623 = vpop.permute.xlu0 %622
  %625 = vset.pattern.permute.xlu0 1
  %626 = vperm.xlu0 %625, %v70
  %v627 = vpop.permute.xlu0 %626
  %629 = vset.pattern.permute.xlu0 1
  %630 = vperm.xlu0 %629, %v71
  %v631 = vpop.permute.xlu0 %630
  %633 = vset.pattern.permute.xlu0 1
  %634 = vperm.xlu0 %633, %v72
  %v635 = vpop.permute.xlu0 %634
  %637 = vset.pattern.permute.xlu0 1
  %638 = vperm.xlu0 %637, %v73
  %v639 = vpop.permute.xlu0 %638
  %641 = vset.pattern.permute.xlu0 1
  %642 = vperm.xlu0 %641, %v74
  %v643 = vpop.permute.xlu0 %642
  %645 = vset.pattern.permute.xlu0 1
  %646 = vperm.xlu0 %645, %v75
  %v647 = vpop.permute.xlu0 %646
  %649 = vset.pattern.permute.xlu0 1
  %650 = vperm.xlu0 %649, %v76
  %v651 = vpop.permute.xlu0 %650
  %653 = vset.pattern.permute.xlu0 1
  %654 = vperm.xlu0 %653, %v77
  %v655 = vpop.permute.xlu0 %654
  %657 = vset.pattern.permute.xlu0 1
  %658 = vperm.xlu0 %657, %v78
  %v659 = vpop.permute.xlu0 %658
  %661 = vset.pattern.permute.xlu0 1
  %662 = vperm.xlu0 %661, %v79
  %v663 = vpop.permute.xlu0 %662
  %665 = vset.pattern.permute.xlu0 1
  %666 = vperm.xlu0 %665, %v80
  %v667 = vpop.permute.xlu0 %666
  %669 = vset.pattern.permute.xlu0 1
  %670 = vperm.xlu0 %669, %v81
  %v671 = vpop.permute.xlu0 %670
  %673 = vset.pattern.permute.xlu0 1
  %674 = vperm.xlu0 %673, %v82
  %v675 = vpop.permute.xlu0 %674
  %677 = vset.pattern.permute.xlu0 1
  %678 = vperm.xlu0 %677, %v83
  %v679 = vpop.permute.xlu0 %678
  %681 = vset.pattern.permute.xlu0 1
  %682 = vperm.xlu0 %681, %v84
  %v683 = vpop.permute.xlu0 %682
  %685 = vset.pattern.permute.xlu0 1
  %686 = vperm.xlu0 %685, %v85
  %v687 = vpop.permute.xlu0 %686
  %689 = vset.pattern.permute.xlu0 1
  %690 = vperm.xlu0 %689, %v86
  %v691 = vpop.permute.xlu0 %690
  %693 = vset.pattern.permute.xlu0 1
  %694 = vperm.xlu0 %693, %v87
  %v695 = vpop.permute.xlu0 %694
  %697 = vset.pattern.permute.xlu0 1
  %698 = vperm.xlu0 %697, %v88
  %v699 = vpop.permute.xlu0 %698
  %701 = vset.pattern.permute.xlu0 1
  %702 = vperm.xlu0 %701, %v89
  %v703 = vpop.permute.xlu0 %702
  %705 = vset.pattern.permute.xlu0 1
  %706 = vperm.xlu0 %705, %v90
  %v707 = vpop.permute.xlu0 %706
  %709 = vset.pattern.permute.xlu0 1
  %710 = vperm.xlu0 %709, %v91
  %v711 = vpop.permute.xlu0 %710
  %713 = vset.pattern.permute.xlu0 1
  %714 = vperm.xlu0 %713, %v92
  %v715 = vpop.permute.xlu0 %714
  %717 = vset.pattern.permute.xlu0 1
  %718 = vperm.xlu0 %717, %v93
  %v719 = vpop.permute.xlu0 %718
  %v721 = vlaneseq
  %v722 = vshrl.u32 %v721, 7
  %v723 = vsub.s32 1, %v722
  %v724 = vrot.slane %v29, %v723
  %v725 = vlaneseq
  %v726 = vshrl.u32 %v725, 7
  %v727 = vsub.s32 5, %v726
  %v728 = vrot.slane %v29, %v727
  %v731 = vlaneseq
  %v732 = vshrl.u32 %v731, 7
  %v733 = vsub.s32 1, %v732
  %v734 = vrot.slane %v724, %v733
  %v735 = vlaneseq
  %v736 = vshrl.u32 %v735, 7
  %v737 = vsub.s32 1, %v736
  %v738 = vrot.slane %v728, %v737
  %v739 = vmul.f32 %v595, %v734
  %v740 = vmul.f32 %v595, %v738
  %v741 = vmul.f32 %v599, %v734
  %v742 = vmul.f32 %v599, %v738
  %v743 = vmul.f32 %v603, %v734
  %v744 = vmul.f32 %v603, %v738
  %v745 = vmul.f32 %v607, %v734
  %v746 = vmul.f32 %v607, %v738
  %v747 = vmul.f32 %v611, %v734
  %v748 = vmul.f32 %v611, %v738
  %v749 = vmul.f32 %v615, %v734
  %v750 = vmul.f32 %v615, %v738
  %v751 = vmul.f32 %v619, %v734
  %v752 = vmul.f32 %v619, %v738
  %v753 = vmul.f32 %v623, %v734
  %v754 = vmul.f32 %v623, %v738
  %v755 = vmul.f32 %v627, %v734
  %v756 = vmul.f32 %v627, %v738
  %v757 = vmul.f32 %v631, %v734
  %v758 = vmul.f32 %v631, %v738
  %v759 = vmul.f32 %v635, %v734
  %v760 = vmul.f32 %v635, %v738
  %v761 = vmul.f32 %v639, %v734
  %v762 = vmul.f32 %v639, %v738
  %v763 = vmul.f32 %v643, %v734
  %v764 = vmul.f32 %v643, %v738
  %v765 = vmul.f32 %v647, %v734
  %v766 = vmul.f32 %v647, %v738
  %v767 = vmul.f32 %v651, %v734
  %v768 = vmul.f32 %v651, %v738
  %v769 = vmul.f32 %v655, %v734
  %v770 = vmul.f32 %v655, %v738
  %v771 = vmul.f32 %v659, %v734
  %v772 = vmul.f32 %v659, %v738
  %v773 = vmul.f32 %v663, %v734
  %v774 = vmul.f32 %v663, %v738
  %v775 = vmul.f32 %v667, %v734
  %v776 = vmul.f32 %v667, %v738
  %v777 = vmul.f32 %v671, %v734
  %v778 = vmul.f32 %v671, %v738
  %v779 = vmul.f32 %v675, %v734
  %v780 = vmul.f32 %v675, %v738
  %v781 = vmul.f32 %v679, %v734
  %v782 = vmul.f32 %v679, %v738
  %v783 = vmul.f32 %v683, %v734
  %v784 = vmul.f32 %v683, %v738
  %v785 = vmul.f32 %v687, %v734
  %v786 = vmul.f32 %v687, %v738
  %v787 = vmul.f32 %v691, %v734
  %v788 = vmul.f32 %v691, %v738
  %v789 = vmul.f32 %v695, %v734
  %v790 = vmul.f32 %v695, %v738
  %v791 = vmul.f32 %v699, %v734
  %v792 = vmul.f32 %v699, %v738
  %v793 = vmul.f32 %v703, %v734
  %v794 = vmul.f32 %v703, %v738
  %v795 = vmul.f32 %v707, %v734
  %v796 = vmul.f32 %v707, %v738
  %v797 = vmul.f32 %v711, %v734
  %v798 = vmul.f32 %v711, %v738
  %v799 = vmul.f32 %v715, %v734
  %v800 = vmul.f32 %v715, %v738
  %v801 = vmul.f32 %v719, %v734
  %v802 = vmul.f32 %v719, %v738
  %v803 = vadd.f32 %v529, %v739
  %v804 = vadd.f32 %v530, %v740
  %v805 = vadd.f32 %v531, %v741
  %v806 = vadd.f32 %v532, %v742
  %v807 = vadd.f32 %v533, %v743
  %v808 = vadd.f32 %v534, %v744
  %v809 = vadd.f32 %v535, %v745
  %v810 = vadd.f32 %v536, %v746
  %v811 = vadd.f32 %v537, %v747
  %v812 = vadd.f32 %v538, %v748
  %v813 = vadd.f32 %v539, %v749
  %v814 = vadd.f32 %v540, %v750
  %v815 = vadd.f32 %v541, %v751
  %v816 = vadd.f32 %v542, %v752
  %v817 = vadd.f32 %v543, %v753
  %v818 = vadd.f32 %v544, %v754
  %v819 = vadd.f32 %v545, %v755
  %v820 = vadd.f32 %v546, %v756
  %v821 = vadd.f32 %v547, %v757
  %v822 = vadd.f32 %v548, %v758
  %v823 = vadd.f32 %v549, %v759
  %v824 = vadd.f32 %v550, %v760
  %v825 = vadd.f32 %v551, %v761
  %v826 = vadd.f32 %v552, %v762
  %v827 = vadd.f32 %v553, %v763
  %v828 = vadd.f32 %v554, %v764
  %v829 = vadd.f32 %v555, %v765
  %v830 = vadd.f32 %v556, %v766
  %v831 = vadd.f32 %v557, %v767
  %v832 = vadd.f32 %v558, %v768
  %v833 = vadd.f32 %v559, %v769
  %v834 = vadd.f32 %v560, %v770
  %v835 = vadd.f32 %v561, %v771
  %v836 = vadd.f32 %v562, %v772
  %v837 = vadd.f32 %v563, %v773
  %v838 = vadd.f32 %v564, %v774
  %v839 = vadd.f32 %v565, %v775
  %v840 = vadd.f32 %v566, %v776
  %v841 = vadd.f32 %v567, %v777
  %v842 = vadd.f32 %v568, %v778
  %v843 = vadd.f32 %v569, %v779
  %v844 = vadd.f32 %v570, %v780
  %v845 = vadd.f32 %v571, %v781
  %v846 = vadd.f32 %v572, %v782
  %v847 = vadd.f32 %v573, %v783
  %v848 = vadd.f32 %v574, %v784
  %v849 = vadd.f32 %v575, %v785
  %v850 = vadd.f32 %v576, %v786
  %v851 = vadd.f32 %v577, %v787
  %v852 = vadd.f32 %v578, %v788
  %v853 = vadd.f32 %v579, %v789
  %v854 = vadd.f32 %v580, %v790
  %v855 = vadd.f32 %v581, %v791
  %v856 = vadd.f32 %v582, %v792
  %v857 = vadd.f32 %v583, %v793
  %v858 = vadd.f32 %v584, %v794
  %v859 = vadd.f32 %v585, %v795
  %v860 = vadd.f32 %v586, %v796
  %v861 = vadd.f32 %v587, %v797
  %v862 = vadd.f32 %v588, %v798
  %v863 = vadd.f32 %v589, %v799
  %v864 = vadd.f32 %v590, %v800
  %v865 = vadd.f32 %v591, %v801
  %v866 = vadd.f32 %v592, %v802
  %867 = vset.pattern.permute.xlu0 2
  %868 = vperm.xlu0 %867, %v62
  %v869 = vpop.permute.xlu0 %868
  %871 = vset.pattern.permute.xlu0 2
  %872 = vperm.xlu0 %871, %v63
  %v873 = vpop.permute.xlu0 %872
  %875 = vset.pattern.permute.xlu0 2
  %876 = vperm.xlu0 %875, %v64
  %v877 = vpop.permute.xlu0 %876
  %879 = vset.pattern.permute.xlu0 2
  %880 = vperm.xlu0 %879, %v65
  %v881 = vpop.permute.xlu0 %880
  %883 = vset.pattern.permute.xlu0 2
  %884 = vperm.xlu0 %883, %v66
  %v885 = vpop.permute.xlu0 %884
  %887 = vset.pattern.permute.xlu0 2
  %888 = vperm.xlu0 %887, %v67
  %v889 = vpop.permute.xlu0 %888
  %891 = vset.pattern.permute.xlu0 2
  %892 = vperm.xlu0 %891, %v68
  %v893 = vpop.permute.xlu0 %892
  %895 = vset.pattern.permute.xlu0 2
  %896 = vperm.xlu0 %895, %v69
  %v897 = vpop.permute.xlu0 %896
  %899 = vset.pattern.permute.xlu0 2
  %900 = vperm.xlu0 %899, %v70
  %v901 = vpop.permute.xlu0 %900
  %903 = vset.pattern.permute.xlu0 2
  %904 = vperm.xlu0 %903, %v71
  %v905 = vpop.permute.xlu0 %904
  %907 = vset.pattern.permute.xlu0 2
  %908 = vperm.xlu0 %907, %v72
  %v909 = vpop.permute.xlu0 %908
  %911 = vset.pattern.permute.xlu0 2
  %912 = vperm.xlu0 %911, %v73
  %v913 = vpop.permute.xlu0 %912
  %915 = vset.pattern.permute.xlu0 2
  %916 = vperm.xlu0 %915, %v74
  %v917 = vpop.permute.xlu0 %916
  %919 = vset.pattern.permute.xlu0 2
  %920 = vperm.xlu0 %919, %v75
  %v921 = vpop.permute.xlu0 %920
  %923 = vset.pattern.permute.xlu0 2
  %924 = vperm.xlu0 %923, %v76
  %v925 = vpop.permute.xlu0 %924
  %927 = vset.pattern.permute.xlu0 2
  %928 = vperm.xlu0 %927, %v77
  %v929 = vpop.permute.xlu0 %928
  %931 = vset.pattern.permute.xlu0 2
  %932 = vperm.xlu0 %931, %v78
  %v933 = vpop.permute.xlu0 %932
  %935 = vset.pattern.permute.xlu0 2
  %936 = vperm.xlu0 %935, %v79
  %v937 = vpop.permute.xlu0 %936
  %939 = vset.pattern.permute.xlu0 2
  %940 = vperm.xlu0 %939, %v80
  %v941 = vpop.permute.xlu0 %940
  %943 = vset.pattern.permute.xlu0 2
  %944 = vperm.xlu0 %943, %v81
  %v945 = vpop.permute.xlu0 %944
  %947 = vset.pattern.permute.xlu0 2
  %948 = vperm.xlu0 %947, %v82
  %v949 = vpop.permute.xlu0 %948
  %951 = vset.pattern.permute.xlu0 2
  %952 = vperm.xlu0 %951, %v83
  %v953 = vpop.permute.xlu0 %952
  %955 = vset.pattern.permute.xlu0 2
  %956 = vperm.xlu0 %955, %v84
  %v957 = vpop.permute.xlu0 %956
  %959 = vset.pattern.permute.xlu0 2
  %960 = vperm.xlu0 %959, %v85
  %v961 = vpop.permute.xlu0 %960
  %963 = vset.pattern.permute.xlu0 2
  %964 = vperm.xlu0 %963, %v86
  %v965 = vpop.permute.xlu0 %964
  %967 = vset.pattern.permute.xlu0 2
  %968 = vperm.xlu0 %967, %v87
  %v969 = vpop.permute.xlu0 %968
  %971 = vset.pattern.permute.xlu0 2
  %972 = vperm.xlu0 %971, %v88
  %v973 = vpop.permute.xlu0 %972
  %975 = vset.pattern.permute.xlu0 2
  %976 = vperm.xlu0 %975, %v89
  %v977 = vpop.permute.xlu0 %976
  %979 = vset.pattern.permute.xlu0 2
  %980 = vperm.xlu0 %979, %v90
  %v981 = vpop.permute.xlu0 %980
  %983 = vset.pattern.permute.xlu0 2
  %984 = vperm.xlu0 %983, %v91
  %v985 = vpop.permute.xlu0 %984
  %987 = vset.pattern.permute.xlu0 2
  %988 = vperm.xlu0 %987, %v92
  %v989 = vpop.permute.xlu0 %988
  %991 = vset.pattern.permute.xlu0 2
  %992 = vperm.xlu0 %991, %v93
  %v993 = vpop.permute.xlu0 %992
  %v995 = vlaneseq
  %v996 = vshrl.u32 %v995, 7
  %v997 = vsub.s32 2, %v996
  %v998 = vrot.slane %v29, %v997
  %v999 = vlaneseq
  %v1000 = vshrl.u32 %v999, 7
  %v1001 = vsub.s32 6, %v1000
  %v1002 = vrot.slane %v29, %v1001
  %v1005 = vlaneseq
  %v1006 = vshrl.u32 %v1005, 7
  %v1007 = vsub.s32 2, %v1006
  %v1008 = vrot.slane %v998, %v1007
  %v1009 = vlaneseq
  %v1010 = vshrl.u32 %v1009, 7
  %v1011 = vsub.s32 2, %v1010
  %v1012 = vrot.slane %v1002, %v1011
  %v1013 = vmul.f32 %v869, %v1008
  %v1014 = vmul.f32 %v869, %v1012
  %v1015 = vmul.f32 %v873, %v1008
  %v1016 = vmul.f32 %v873, %v1012
  %v1017 = vmul.f32 %v877, %v1008
  %v1018 = vmul.f32 %v877, %v1012
  %v1019 = vmul.f32 %v881, %v1008
  %v1020 = vmul.f32 %v881, %v1012
  %v1021 = vmul.f32 %v885, %v1008
  %v1022 = vmul.f32 %v885, %v1012
  %v1023 = vmul.f32 %v889, %v1008
  %v1024 = vmul.f32 %v889, %v1012
  %v1025 = vmul.f32 %v893, %v1008
  %v1026 = vmul.f32 %v893, %v1012
  %v1027 = vmul.f32 %v897, %v1008
  %v1028 = vmul.f32 %v897, %v1012
  %v1029 = vmul.f32 %v901, %v1008
  %v1030 = vmul.f32 %v901, %v1012
  %v1031 = vmul.f32 %v905, %v1008
  %v1032 = vmul.f32 %v905, %v1012
  %v1033 = vmul.f32 %v909, %v1008
  %v1034 = vmul.f32 %v909, %v1012
  %v1035 = vmul.f32 %v913, %v1008
  %v1036 = vmul.f32 %v913, %v1012
  %v1037 = vmul.f32 %v917, %v1008
  %v1038 = vmul.f32 %v917, %v1012
  %v1039 = vmul.f32 %v921, %v1008
  %v1040 = vmul.f32 %v921, %v1012
  %v1041 = vmul.f32 %v925, %v1008
  %v1042 = vmul.f32 %v925, %v1012
  %v1043 = vmul.f32 %v929, %v1008
  %v1044 = vmul.f32 %v929, %v1012
  %v1045 = vmul.f32 %v933, %v1008
  %v1046 = vmul.f32 %v933, %v1012
  %v1047 = vmul.f32 %v937, %v1008
  %v1048 = vmul.f32 %v937, %v1012
  %v1049 = vmul.f32 %v941, %v1008
  %v1050 = vmul.f32 %v941, %v1012
  %v1051 = vmul.f32 %v945, %v1008
  %v1052 = vmul.f32 %v945, %v1012
  %v1053 = vmul.f32 %v949, %v1008
  %v1054 = vmul.f32 %v949, %v1012
  %v1055 = vmul.f32 %v953, %v1008
  %v1056 = vmul.f32 %v953, %v1012
  %v1057 = vmul.f32 %v957, %v1008
  %v1058 = vmul.f32 %v957, %v1012
  %v1059 = vmul.f32 %v961, %v1008
  %v1060 = vmul.f32 %v961, %v1012
  %v1061 = vmul.f32 %v965, %v1008
  %v1062 = vmul.f32 %v965, %v1012
  %v1063 = vmul.f32 %v969, %v1008
  %v1064 = vmul.f32 %v969, %v1012
  %v1065 = vmul.f32 %v973, %v1008
  %v1066 = vmul.f32 %v973, %v1012
  %v1067 = vmul.f32 %v977, %v1008
  %v1068 = vmul.f32 %v977, %v1012
  %v1069 = vmul.f32 %v981, %v1008
  %v1070 = vmul.f32 %v981, %v1012
  %v1071 = vmul.f32 %v985, %v1008
  %v1072 = vmul.f32 %v985, %v1012
  %v1073 = vmul.f32 %v989, %v1008
  %v1074 = vmul.f32 %v989, %v1012
  %v1075 = vmul.f32 %v993, %v1008
  %v1076 = vmul.f32 %v993, %v1012
  %v1077 = vadd.f32 %v803, %v1013
  %v1078 = vadd.f32 %v804, %v1014
  %v1079 = vadd.f32 %v805, %v1015
  %v1080 = vadd.f32 %v806, %v1016
  %v1081 = vadd.f32 %v807, %v1017
  %v1082 = vadd.f32 %v808, %v1018
  %v1083 = vadd.f32 %v809, %v1019
  %v1084 = vadd.f32 %v810, %v1020
  %v1085 = vadd.f32 %v811, %v1021
  %v1086 = vadd.f32 %v812, %v1022
  %v1087 = vadd.f32 %v813, %v1023
  %v1088 = vadd.f32 %v814, %v1024
  %v1089 = vadd.f32 %v815, %v1025
  %v1090 = vadd.f32 %v816, %v1026
  %v1091 = vadd.f32 %v817, %v1027
  %v1092 = vadd.f32 %v818, %v1028
  %v1093 = vadd.f32 %v819, %v1029
  %v1094 = vadd.f32 %v820, %v1030
  %v1095 = vadd.f32 %v821, %v1031
  %v1096 = vadd.f32 %v822, %v1032
  %v1097 = vadd.f32 %v823, %v1033
  %v1098 = vadd.f32 %v824, %v1034
  %v1099 = vadd.f32 %v825, %v1035
  %v1100 = vadd.f32 %v826, %v1036
  %v1101 = vadd.f32 %v827, %v1037
  %v1102 = vadd.f32 %v828, %v1038
  %v1103 = vadd.f32 %v829, %v1039
  %v1104 = vadd.f32 %v830, %v1040
  %v1105 = vadd.f32 %v831, %v1041
  %v1106 = vadd.f32 %v832, %v1042
  %v1107 = vadd.f32 %v833, %v1043
  %v1108 = vadd.f32 %v834, %v1044
  %v1109 = vadd.f32 %v835, %v1045
  %v1110 = vadd.f32 %v836, %v1046
  %v1111 = vadd.f32 %v837, %v1047
  %v1112 = vadd.f32 %v838, %v1048
  %v1113 = vadd.f32 %v839, %v1049
  %v1114 = vadd.f32 %v840, %v1050
  %v1115 = vadd.f32 %v841, %v1051
  %v1116 = vadd.f32 %v842, %v1052
  %v1117 = vadd.f32 %v843, %v1053
  %v1118 = vadd.f32 %v844, %v1054
  %v1119 = vadd.f32 %v845, %v1055
  %v1120 = vadd.f32 %v846, %v1056
  %v1121 = vadd.f32 %v847, %v1057
  %v1122 = vadd.f32 %v848, %v1058
  %v1123 = vadd.f32 %v849, %v1059
  %v1124 = vadd.f32 %v850, %v1060
  %v1125 = vadd.f32 %v851, %v1061
  %v1126 = vadd.f32 %v852, %v1062
  %v1127 = vadd.f32 %v853, %v1063
  %v1128 = vadd.f32 %v854, %v1064
  %v1129 = vadd.f32 %v855, %v1065
  %v1130 = vadd.f32 %v856, %v1066
  %v1131 = vadd.f32 %v857, %v1067
  %v1132 = vadd.f32 %v858, %v1068
  %v1133 = vadd.f32 %v859, %v1069
  %v1134 = vadd.f32 %v860, %v1070
  %v1135 = vadd.f32 %v861, %v1071
  %v1136 = vadd.f32 %v862, %v1072
  %v1137 = vadd.f32 %v863, %v1073
  %v1138 = vadd.f32 %v864, %v1074
  %v1139 = vadd.f32 %v865, %v1075
  %v1140 = vadd.f32 %v866, %v1076
  %1141 = vset.pattern.permute.xlu0 3
  %1142 = vperm.xlu0 %1141, %v62
  %v1143 = vpop.permute.xlu0 %1142
  %1145 = vset.pattern.permute.xlu0 3
  %1146 = vperm.xlu0 %1145, %v63
  %v1147 = vpop.permute.xlu0 %1146
  %1149 = vset.pattern.permute.xlu0 3
  %1150 = vperm.xlu0 %1149, %v64
  %v1151 = vpop.permute.xlu0 %1150
  %1153 = vset.pattern.permute.xlu0 3
  %1154 = vperm.xlu0 %1153, %v65
  %v1155 = vpop.permute.xlu0 %1154
  %1157 = vset.pattern.permute.xlu0 3
  %1158 = vperm.xlu0 %1157, %v66
  %v1159 = vpop.permute.xlu0 %1158
  %1161 = vset.pattern.permute.xlu0 3
  %1162 = vperm.xlu0 %1161, %v67
  %v1163 = vpop.permute.xlu0 %1162
  %1165 = vset.pattern.permute.xlu0 3
  %1166 = vperm.xlu0 %1165, %v68
  %v1167 = vpop.permute.xlu0 %1166
  %1169 = vset.pattern.permute.xlu0 3
  %1170 = vperm.xlu0 %1169, %v69
  %v1171 = vpop.permute.xlu0 %1170
  %1173 = vset.pattern.permute.xlu0 3
  %1174 = vperm.xlu0 %1173, %v70
  %v1175 = vpop.permute.xlu0 %1174
  %1177 = vset.pattern.permute.xlu0 3
  %1178 = vperm.xlu0 %1177, %v71
  %v1179 = vpop.permute.xlu0 %1178
  %1181 = vset.pattern.permute.xlu0 3
  %1182 = vperm.xlu0 %1181, %v72
  %v1183 = vpop.permute.xlu0 %1182
  %1185 = vset.pattern.permute.xlu0 3
  %1186 = vperm.xlu0 %1185, %v73
  %v1187 = vpop.permute.xlu0 %1186
  %1189 = vset.pattern.permute.xlu0 3
  %1190 = vperm.xlu0 %1189, %v74
  %v1191 = vpop.permute.xlu0 %1190
  %1193 = vset.pattern.permute.xlu0 3
  %1194 = vperm.xlu0 %1193, %v75
  %v1195 = vpop.permute.xlu0 %1194
  %1197 = vset.pattern.permute.xlu0 3
  %1198 = vperm.xlu0 %1197, %v76
  %v1199 = vpop.permute.xlu0 %1198
  %1201 = vset.pattern.permute.xlu0 3
  %1202 = vperm.xlu0 %1201, %v77
  %v1203 = vpop.permute.xlu0 %1202
  %1205 = vset.pattern.permute.xlu0 3
  %1206 = vperm.xlu0 %1205, %v78
  %v1207 = vpop.permute.xlu0 %1206
  %1209 = vset.pattern.permute.xlu0 3
  %1210 = vperm.xlu0 %1209, %v79
  %v1211 = vpop.permute.xlu0 %1210
  %1213 = vset.pattern.permute.xlu0 3
  %1214 = vperm.xlu0 %1213, %v80
  %v1215 = vpop.permute.xlu0 %1214
  %1217 = vset.pattern.permute.xlu0 3
  %1218 = vperm.xlu0 %1217, %v81
  %v1219 = vpop.permute.xlu0 %1218
  %1221 = vset.pattern.permute.xlu0 3
  %1222 = vperm.xlu0 %1221, %v82
  %v1223 = vpop.permute.xlu0 %1222
  %1225 = vset.pattern.permute.xlu0 3
  %1226 = vperm.xlu0 %1225, %v83
  %v1227 = vpop.permute.xlu0 %1226
  %1229 = vset.pattern.permute.xlu0 3
  %1230 = vperm.xlu0 %1229, %v84
  %v1231 = vpop.permute.xlu0 %1230
  %1233 = vset.pattern.permute.xlu0 3
  %1234 = vperm.xlu0 %1233, %v85
  %v1235 = vpop.permute.xlu0 %1234
  %1237 = vset.pattern.permute.xlu0 3
  %1238 = vperm.xlu0 %1237, %v86
  %v1239 = vpop.permute.xlu0 %1238
  %1241 = vset.pattern.permute.xlu0 3
  %1242 = vperm.xlu0 %1241, %v87
  %v1243 = vpop.permute.xlu0 %1242
  %1245 = vset.pattern.permute.xlu0 3
  %1246 = vperm.xlu0 %1245, %v88
  %v1247 = vpop.permute.xlu0 %1246
  %1249 = vset.pattern.permute.xlu0 3
  %1250 = vperm.xlu0 %1249, %v89
  %v1251 = vpop.permute.xlu0 %1250
  %1253 = vset.pattern.permute.xlu0 3
  %1254 = vperm.xlu0 %1253, %v90
  %v1255 = vpop.permute.xlu0 %1254
  %1257 = vset.pattern.permute.xlu0 3
  %1258 = vperm.xlu0 %1257, %v91
  %v1259 = vpop.permute.xlu0 %1258
  %1261 = vset.pattern.permute.xlu0 3
  %1262 = vperm.xlu0 %1261, %v92
  %v1263 = vpop.permute.xlu0 %1262
  %1265 = vset.pattern.permute.xlu0 3
  %1266 = vperm.xlu0 %1265, %v93
  %v1267 = vpop.permute.xlu0 %1266
  %v1269 = vlaneseq
  %v1270 = vshrl.u32 %v1269, 7
  %v1271 = vsub.s32 3, %v1270
  %v1272 = vrot.slane %v29, %v1271
  %v1273 = vlaneseq
  %v1274 = vshrl.u32 %v1273, 7
  %v1275 = vsub.s32 7, %v1274
  %v1276 = vrot.slane %v29, %v1275
  %v1279 = vlaneseq
  %v1280 = vshrl.u32 %v1279, 7
  %v1281 = vsub.s32 3, %v1280
  %v1282 = vrot.slane %v1272, %v1281
  %v1283 = vlaneseq
  %v1284 = vshrl.u32 %v1283, 7
  %v1285 = vsub.s32 3, %v1284
  %v1286 = vrot.slane %v1276, %v1285
  %v1287 = vmul.f32 %v1143, %v1282
  %v1288 = vmul.f32 %v1143, %v1286
  %v1289 = vmul.f32 %v1147, %v1282
  %v1290 = vmul.f32 %v1147, %v1286
  %v1291 = vmul.f32 %v1151, %v1282
  %v1292 = vmul.f32 %v1151, %v1286
  %v1293 = vmul.f32 %v1155, %v1282
  %v1294 = vmul.f32 %v1155, %v1286
  %v1295 = vmul.f32 %v1159, %v1282
  %v1296 = vmul.f32 %v1159, %v1286
  %v1297 = vmul.f32 %v1163, %v1282
  %v1298 = vmul.f32 %v1163, %v1286
  %v1299 = vmul.f32 %v1167, %v1282
  %v1300 = vmul.f32 %v1167, %v1286
  %v1301 = vmul.f32 %v1171, %v1282
  %v1302 = vmul.f32 %v1171, %v1286
  %v1303 = vmul.f32 %v1175, %v1282
  %v1304 = vmul.f32 %v1175, %v1286
  %v1305 = vmul.f32 %v1179, %v1282
  %v1306 = vmul.f32 %v1179, %v1286
  %v1307 = vmul.f32 %v1183, %v1282
  %v1308 = vmul.f32 %v1183, %v1286
  %v1309 = vmul.f32 %v1187, %v1282
  %v1310 = vmul.f32 %v1187, %v1286
  %v1311 = vmul.f32 %v1191, %v1282
  %v1312 = vmul.f32 %v1191, %v1286
  %v1313 = vmul.f32 %v1195, %v1282
  %v1314 = vmul.f32 %v1195, %v1286
  %v1315 = vmul.f32 %v1199, %v1282
  %v1316 = vmul.f32 %v1199, %v1286
  %v1317 = vmul.f32 %v1203, %v1282
  %v1318 = vmul.f32 %v1203, %v1286
  %v1319 = vmul.f32 %v1207, %v1282
  %v1320 = vmul.f32 %v1207, %v1286
  %v1321 = vmul.f32 %v1211, %v1282
  %v1322 = vmul.f32 %v1211, %v1286
  %v1323 = vmul.f32 %v1215, %v1282
  %v1324 = vmul.f32 %v1215, %v1286
  %v1325 = vmul.f32 %v1219, %v1282
  %v1326 = vmul.f32 %v1219, %v1286
  %v1327 = vmul.f32 %v1223, %v1282
  %v1328 = vmul.f32 %v1223, %v1286
  %v1329 = vmul.f32 %v1227, %v1282
  %v1330 = vmul.f32 %v1227, %v1286
  %v1331 = vmul.f32 %v1231, %v1282
  %v1332 = vmul.f32 %v1231, %v1286
  %v1333 = vmul.f32 %v1235, %v1282
  %v1334 = vmul.f32 %v1235, %v1286
  %v1335 = vmul.f32 %v1239, %v1282
  %v1336 = vmul.f32 %v1239, %v1286
  %v1337 = vmul.f32 %v1243, %v1282
  %v1338 = vmul.f32 %v1243, %v1286
  %v1339 = vmul.f32 %v1247, %v1282
  %v1340 = vmul.f32 %v1247, %v1286
  %v1341 = vmul.f32 %v1251, %v1282
  %v1342 = vmul.f32 %v1251, %v1286
  %v1343 = vmul.f32 %v1255, %v1282
  %v1344 = vmul.f32 %v1255, %v1286
  %v1345 = vmul.f32 %v1259, %v1282
  %v1346 = vmul.f32 %v1259, %v1286
  %v1347 = vmul.f32 %v1263, %v1282
  %v1348 = vmul.f32 %v1263, %v1286
  %v1349 = vmul.f32 %v1267, %v1282
  %v1350 = vmul.f32 %v1267, %v1286
  %v1351 = vadd.f32 %v1077, %v1287
  %v1352 = vadd.f32 %v1078, %v1288
  %v1353 = vadd.f32 %v1079, %v1289
  %v1354 = vadd.f32 %v1080, %v1290
  %v1355 = vadd.f32 %v1081, %v1291
  %v1356 = vadd.f32 %v1082, %v1292
  %v1357 = vadd.f32 %v1083, %v1293
  %v1358 = vadd.f32 %v1084, %v1294
  %v1359 = vadd.f32 %v1085, %v1295
  %v1360 = vadd.f32 %v1086, %v1296
  %v1361 = vadd.f32 %v1087, %v1297
  %v1362 = vadd.f32 %v1088, %v1298
  %v1363 = vadd.f32 %v1089, %v1299
  %v1364 = vadd.f32 %v1090, %v1300
  %v1365 = vadd.f32 %v1091, %v1301
  %v1366 = vadd.f32 %v1092, %v1302
  %v1367 = vadd.f32 %v1093, %v1303
  %v1368 = vadd.f32 %v1094, %v1304
  %v1369 = vadd.f32 %v1095, %v1305
  %v1370 = vadd.f32 %v1096, %v1306
  %v1371 = vadd.f32 %v1097, %v1307
  %v1372 = vadd.f32 %v1098, %v1308
  %v1373 = vadd.f32 %v1099, %v1309
  %v1374 = vadd.f32 %v1100, %v1310
  %v1375 = vadd.f32 %v1101, %v1311
  %v1376 = vadd.f32 %v1102, %v1312
  %v1377 = vadd.f32 %v1103, %v1313
  %v1378 = vadd.f32 %v1104, %v1314
  %v1379 = vadd.f32 %v1105, %v1315
  %v1380 = vadd.f32 %v1106, %v1316
  %v1381 = vadd.f32 %v1107, %v1317
  %v1382 = vadd.f32 %v1108, %v1318
  %v1383 = vadd.f32 %v1109, %v1319
  %v1384 = vadd.f32 %v1110, %v1320
  %v1385 = vadd.f32 %v1111, %v1321
  %v1386 = vadd.f32 %v1112, %v1322
  %v1387 = vadd.f32 %v1113, %v1323
  %v1388 = vadd.f32 %v1114, %v1324
  %v1389 = vadd.f32 %v1115, %v1325
  %v1390 = vadd.f32 %v1116, %v1326
  %v1391 = vadd.f32 %v1117, %v1327
  %v1392 = vadd.f32 %v1118, %v1328
  %v1393 = vadd.f32 %v1119, %v1329
  %v1394 = vadd.f32 %v1120, %v1330
  %v1395 = vadd.f32 %v1121, %v1331
  %v1396 = vadd.f32 %v1122, %v1332
  %v1397 = vadd.f32 %v1123, %v1333
  %v1398 = vadd.f32 %v1124, %v1334
  %v1399 = vadd.f32 %v1125, %v1335
  %v1400 = vadd.f32 %v1126, %v1336
  %v1401 = vadd.f32 %v1127, %v1337
  %v1402 = vadd.f32 %v1128, %v1338
  %v1403 = vadd.f32 %v1129, %v1339
  %v1404 = vadd.f32 %v1130, %v1340
  %v1405 = vadd.f32 %v1131, %v1341
  %v1406 = vadd.f32 %v1132, %v1342
  %v1407 = vadd.f32 %v1133, %v1343
  %v1408 = vadd.f32 %v1134, %v1344
  %v1409 = vadd.f32 %v1135, %v1345
  %v1410 = vadd.f32 %v1136, %v1346
  %v1411 = vadd.f32 %v1137, %v1347
  %v1412 = vadd.f32 %v1138, %v1348
  %v1413 = vadd.f32 %v1139, %v1349
  %v1414 = vadd.f32 %v1140, %v1350
  %v1415 = vmax.f32 %v1351, 0.0
  %v1416 = vmax.f32 %v1352, 0.0
  %v1417 = vmax.f32 %v1353, 0.0
  %v1418 = vmax.f32 %v1354, 0.0
  %v1419 = vmax.f32 %v1355, 0.0
  %v1420 = vmax.f32 %v1356, 0.0
  %v1421 = vmax.f32 %v1357, 0.0
  %v1422 = vmax.f32 %v1358, 0.0
  %v1423 = vmax.f32 %v1359, 0.0
  %v1424 = vmax.f32 %v1360, 0.0
  %v1425 = vmax.f32 %v1361, 0.0
  %v1426 = vmax.f32 %v1362, 0.0
  %v1427 = vmax.f32 %v1363, 0.0
  %v1428 = vmax.f32 %v1364, 0.0
  %v1429 = vmax.f32 %v1365, 0.0
  %v1430 = vmax.f32 %v1366, 0.0
  %v1431 = vmax.f32 %v1367, 0.0
  %v1432 = vmax.f32 %v1368, 0.0
  %v1433 = vmax.f32 %v1369, 0.0
  %v1434 = vmax.f32 %v1370, 0.0
  %v1435 = vmax.f32 %v1371, 0.0
  %v1436 = vmax.f32 %v1372, 0.0
  %v1437 = vmax.f32 %v1373, 0.0
  %v1438 = vmax.f32 %v1374, 0.0
  %v1439 = vmax.f32 %v1375, 0.0
  %v1440 = vmax.f32 %v1376, 0.0
  %v1441 = vmax.f32 %v1377, 0.0
  %v1442 = vmax.f32 %v1378, 0.0
  %v1443 = vmax.f32 %v1379, 0.0
  %v1444 = vmax.f32 %v1380, 0.0
  %v1445 = vmax.f32 %v1381, 0.0
  %v1446 = vmax.f32 %v1382, 0.0
  %v1447 = vmax.f32 %v1383, 0.0
  %v1448 = vmax.f32 %v1384, 0.0
  %v1449 = vmax.f32 %v1385, 0.0
  %v1450 = vmax.f32 %v1386, 0.0
  %v1451 = vmax.f32 %v1387, 0.0
  %v1452 = vmax.f32 %v1388, 0.0
  %v1453 = vmax.f32 %v1389, 0.0
  %v1454 = vmax.f32 %v1390, 0.0
  %v1455 = vmax.f32 %v1391, 0.0
  %v1456 = vmax.f32 %v1392, 0.0
  %v1457 = vmax.f32 %v1393, 0.0
  %v1458 = vmax.f32 %v1394, 0.0
  %v1459 = vmax.f32 %v1395, 0.0
  %v1460 = vmax.f32 %v1396, 0.0
  %v1461 = vmax.f32 %v1397, 0.0
  %v1462 = vmax.f32 %v1398, 0.0
  %v1463 = vmax.f32 %v1399, 0.0
  %v1464 = vmax.f32 %v1400, 0.0
  %v1465 = vmax.f32 %v1401, 0.0
  %v1466 = vmax.f32 %v1402, 0.0
  %v1467 = vmax.f32 %v1403, 0.0
  %v1468 = vmax.f32 %v1404, 0.0
  %v1469 = vmax.f32 %v1405, 0.0
  %v1470 = vmax.f32 %v1406, 0.0
  %v1471 = vmax.f32 %v1407, 0.0
  %v1472 = vmax.f32 %v1408, 0.0
  %v1473 = vmax.f32 %v1409, 0.0
  %v1474 = vmax.f32 %v1410, 0.0
  %v1475 = vmax.f32 %v1411, 0.0
  %v1476 = vmax.f32 %v1412, 0.0
  %v1477 = vmax.f32 %v1413, 0.0
  %v1478 = vmax.f32 %v1414, 0.0
  %v1479 = vld [vmem:[%s3] sm:$0xff]
  %v1480 = vld [vmem:[%s3 + $0x8] sm:$0xff]
  %v1481 = vld [vmem:[%s3 + $0x10] sm:$0xff]
  %v1482 = vld [vmem:[%s3 + $0x18] sm:$0xff]
  %v1483 = vld [vmem:[%s3 + $0x20] sm:$0xff]
  %v1484 = vld [vmem:[%s3 + $0x28] sm:$0xff]
  %v1485 = vld [vmem:[%s3 + $0x30] sm:$0xff]
  %v1486 = vld [vmem:[%s3 + $0x38] sm:$0xff]
  %v1487 = vld [vmem:[%s3 + $0x40] sm:$0xff]
  %v1488 = vld [vmem:[%s3 + $0x48] sm:$0xff]
  %v1489 = vld [vmem:[%s3 + $0x50] sm:$0xff]
  %v1490 = vld [vmem:[%s3 + $0x58] sm:$0xff]
  %v1491 = vld [vmem:[%s3 + $0x60] sm:$0xff]
  %v1492 = vld [vmem:[%s3 + $0x68] sm:$0xff]
  %v1493 = vld [vmem:[%s3 + $0x70] sm:$0xff]
  %v1494 = vld [vmem:[%s3 + $0x78] sm:$0xff]
  %v1495 = vld [vmem:[%s3 + $0x80] sm:$0xff]
  %v1496 = vld [vmem:[%s3 + $0x88] sm:$0xff]
  %v1497 = vld [vmem:[%s3 + $0x90] sm:$0xff]
  %v1498 = vld [vmem:[%s3 + $0x98] sm:$0xff]
  %v1499 = vld [vmem:[%s3 + $0xa0] sm:$0xff]
  %v1500 = vld [vmem:[%s3 + $0xa8] sm:$0xff]
  %v1501 = vld [vmem:[%s3 + $0xb0] sm:$0xff]
  %v1502 = vld [vmem:[%s3 + $0xb8] sm:$0xff]
  %v1503 = vld [vmem:[%s3 + $0xc0] sm:$0xff]
  %v1504 = vld [vmem:[%s3 + $0xc8] sm:$0xff]
  %v1505 = vld [vmem:[%s3 + $0xd0] sm:$0xff]
  %v1506 = vld [vmem:[%s3 + $0xd8] sm:$0xff]
  %v1507 = vld [vmem:[%s3 + $0xe0] sm:$0xff]
  %v1508 = vld [vmem:[%s3 + $0xe8] sm:$0xff]
  %v1509 = vld [vmem:[%s3 + $0xf0] sm:$0xff]
  %v1510 = vld [vmem:[%s3 + $0xf8] sm:$0xff]
  %v1511 = vpack.c.bf16 %v1417, %v1415
  %v1512 = vpack.c.bf16 %v1418, %v1416
  %v1513 = vpack.c.bf16 %v1421, %v1419
  %v1514 = vpack.c.bf16 %v1422, %v1420
  %v1515 = vpack.c.bf16 %v1425, %v1423
  %v1516 = vpack.c.bf16 %v1426, %v1424
  %v1517 = vpack.c.bf16 %v1429, %v1427
  %v1518 = vpack.c.bf16 %v1430, %v1428
  %v1519 = vpack.c.bf16 %v1433, %v1431
  %v1520 = vpack.c.bf16 %v1434, %v1432
  %v1521 = vpack.c.bf16 %v1437, %v1435
  %v1522 = vpack.c.bf16 %v1438, %v1436
  %v1523 = vpack.c.bf16 %v1441, %v1439
  %v1524 = vpack.c.bf16 %v1442, %v1440
  %v1525 = vpack.c.bf16 %v1445, %v1443
  %v1526 = vpack.c.bf16 %v1446, %v1444
  %v1527 = vpack.c.bf16 %v1449, %v1447
  %v1528 = vpack.c.bf16 %v1450, %v1448
  %v1529 = vpack.c.bf16 %v1453, %v1451
  %v1530 = vpack.c.bf16 %v1454, %v1452
  %v1531 = vpack.c.bf16 %v1457, %v1455
  %v1532 = vpack.c.bf16 %v1458, %v1456
  %v1533 = vpack.c.bf16 %v1461, %v1459
  %v1534 = vpack.c.bf16 %v1462, %v1460
  %v1535 = vpack.c.bf16 %v1465, %v1463
  %v1536 = vpack.c.bf16 %v1466, %v1464
  %v1537 = vpack.c.bf16 %v1469, %v1467
  %v1538 = vpack.c.bf16 %v1470, %v1468
  %v1539 = vpack.c.bf16 %v1473, %v1471
  %v1540 = vpack.c.bf16 %v1474, %v1472
  %v1541 = vpack.c.bf16 %v1477, %v1475
  %v1542 = vpack.c.bf16 %v1478, %v1476
  %v1543 = vld [vmem:[%s4] sm:$0xff]
  %v1544 = vld [vmem:[%s4 + $0x8] sm:$0xff]
  %v1545 = vld [vmem:[%s4 + $0x10] sm:$0xff]
  %v1546 = vld [vmem:[%s4 + $0x18] sm:$0xff]
  %v1547 = vld [vmem:[%s4 + $0x20] sm:$0xff]
  %v1548 = vld [vmem:[%s4 + $0x28] sm:$0xff]
  %v1549 = vld [vmem:[%s4 + $0x30] sm:$0xff]
  %v1550 = vld [vmem:[%s4 + $0x38] sm:$0xff]
  %v1551 = vld [vmem:[%s4 + $0x40] sm:$0xff]
  %v1552 = vld [vmem:[%s4 + $0x48] sm:$0xff]
  %v1553 = vld [vmem:[%s4 + $0x50] sm:$0xff]
  %v1554 = vld [vmem:[%s4 + $0x58] sm:$0xff]
  %v1555 = vld [vmem:[%s4 + $0x60] sm:$0xff]
  %v1556 = vld [vmem:[%s4 + $0x68] sm:$0xff]
  %v1557 = vld [vmem:[%s4 + $0x70] sm:$0xff]
  %v1558 = vld [vmem:[%s4 + $0x78] sm:$0xff]
  %v1559 = vld [vmem:[%s4 + $0x80] sm:$0xff]
  %v1560 = vld [vmem:[%s4 + $0x88] sm:$0xff]
  %v1561 = vld [vmem:[%s4 + $0x90] sm:$0xff]
  %v1562 = vld [vmem:[%s4 + $0x98] sm:$0xff]
  %v1563 = vld [vmem:[%s4 + $0xa0] sm:$0xff]
  %v1564 = vld [vmem:[%s4 + $0xa8] sm:$0xff]
  %v1565 = vld [vmem:[%s4 + $0xb0] sm:$0xff]
  %v1566 = vld [vmem:[%s4 + $0xb8] sm:$0xff]
  %v1567 = vld [vmem:[%s4 + $0xc0] sm:$0xff]
  %v1568 = vld [vmem:[%s4 + $0xc8] sm:$0xff]
  %v1569 = vld [vmem:[%s4 + $0xd0] sm:$0xff]
  %v1570 = vld [vmem:[%s4 + $0xd8] sm:$0xff]
  %v1571 = vld [vmem:[%s4 + $0xe0] sm:$0xff]
  %v1572 = vld [vmem:[%s4 + $0xe8] sm:$0xff]
  %v1573 = vld [vmem:[%s4 + $0xf0] sm:$0xff]
  %v1574 = vld [vmem:[%s4 + $0xf8] sm:$0xff]
  %1576 = vset.pattern.permute.xlu0 0
  %1577 = vperm.xlu0 %1576, %v1543
  %v1578 = vpop.permute.xlu0 %1577
  %1581 = vset.pattern.permute.xlu0 0
  %1582 = vperm.xlu0 %1581, %v1544
  %v1583 = vpop.permute.xlu0 %1582
  %1586 = vset.pattern.permute.xlu0 0
  %1587 = vperm.xlu0 %1586, %v1545
  %v1588 = vpop.permute.xlu0 %1587
  %1591 = vset.pattern.permute.xlu0 0
  %1592 = vperm.xlu0 %1591, %v1546
  %v1593 = vpop.permute.xlu0 %1592
  %1596 = vset.pattern.permute.xlu0 0
  %1597 = vperm.xlu0 %1596, %v1547
  %v1598 = vpop.permute.xlu0 %1597
  %1601 = vset.pattern.permute.xlu0 0
  %1602 = vperm.xlu0 %1601, %v1548
  %v1603 = vpop.permute.xlu0 %1602
  %1606 = vset.pattern.permute.xlu0 0
  %1607 = vperm.xlu0 %1606, %v1549
  %v1608 = vpop.permute.xlu0 %1607
  %1611 = vset.pattern.permute.xlu0 0
  %1612 = vperm.xlu0 %1611, %v1550
  %v1613 = vpop.permute.xlu0 %1612
  %1616 = vset.pattern.permute.xlu0 0
  %1617 = vperm.xlu0 %1616, %v1551
  %v1618 = vpop.permute.xlu0 %1617
  %1621 = vset.pattern.permute.xlu0 0
  %1622 = vperm.xlu0 %1621, %v1552
  %v1623 = vpop.permute.xlu0 %1622
  %1626 = vset.pattern.permute.xlu0 0
  %1627 = vperm.xlu0 %1626, %v1553
  %v1628 = vpop.permute.xlu0 %1627
  %1631 = vset.pattern.permute.xlu0 0
  %1632 = vperm.xlu0 %1631, %v1554
  %v1633 = vpop.permute.xlu0 %1632
  %1636 = vset.pattern.permute.xlu0 0
  %1637 = vperm.xlu0 %1636, %v1555
  %v1638 = vpop.permute.xlu0 %1637
  %1641 = vset.pattern.permute.xlu0 0
  %1642 = vperm.xlu0 %1641, %v1556
  %v1643 = vpop.permute.xlu0 %1642
  %1646 = vset.pattern.permute.xlu0 0
  %1647 = vperm.xlu0 %1646, %v1557
  %v1648 = vpop.permute.xlu0 %1647
  %1651 = vset.pattern.permute.xlu0 0
  %1652 = vperm.xlu0 %1651, %v1558
  %v1653 = vpop.permute.xlu0 %1652
  %1656 = vset.pattern.permute.xlu0 0
  %1657 = vperm.xlu0 %1656, %v1559
  %v1658 = vpop.permute.xlu0 %1657
  %1661 = vset.pattern.permute.xlu0 0
  %1662 = vperm.xlu0 %1661, %v1560
  %v1663 = vpop.permute.xlu0 %1662
  %1666 = vset.pattern.permute.xlu0 0
  %1667 = vperm.xlu0 %1666, %v1561
  %v1668 = vpop.permute.xlu0 %1667
  %1671 = vset.pattern.permute.xlu0 0
  %1672 = vperm.xlu0 %1671, %v1562
  %v1673 = vpop.permute.xlu0 %1672
  %1676 = vset.pattern.permute.xlu0 0
  %1677 = vperm.xlu0 %1676, %v1563
  %v1678 = vpop.permute.xlu0 %1677
  %1681 = vset.pattern.permute.xlu0 0
  %1682 = vperm.xlu0 %1681, %v1564
  %v1683 = vpop.permute.xlu0 %1682
  %1686 = vset.pattern.permute.xlu0 0
  %1687 = vperm.xlu0 %1686, %v1565
  %v1688 = vpop.permute.xlu0 %1687
  %1691 = vset.pattern.permute.xlu0 0
  %1692 = vperm.xlu0 %1691, %v1566
  %v1693 = vpop.permute.xlu0 %1692
  %1696 = vset.pattern.permute.xlu0 0
  %1697 = vperm.xlu0 %1696, %v1567
  %v1698 = vpop.permute.xlu0 %1697
  %1701 = vset.pattern.permute.xlu0 0
  %1702 = vperm.xlu0 %1701, %v1568
  %v1703 = vpop.permute.xlu0 %1702
  %1706 = vset.pattern.permute.xlu0 0
  %1707 = vperm.xlu0 %1706, %v1569
  %v1708 = vpop.permute.xlu0 %1707
  %1711 = vset.pattern.permute.xlu0 0
  %1712 = vperm.xlu0 %1711, %v1570
  %v1713 = vpop.permute.xlu0 %1712
  %1716 = vset.pattern.permute.xlu0 0
  %1717 = vperm.xlu0 %1716, %v1571
  %v1718 = vpop.permute.xlu0 %1717
  %1721 = vset.pattern.permute.xlu0 0
  %1722 = vperm.xlu0 %1721, %v1572
  %v1723 = vpop.permute.xlu0 %1722
  %1726 = vset.pattern.permute.xlu0 0
  %1727 = vperm.xlu0 %1726, %v1573
  %v1728 = vpop.permute.xlu0 %1727
  %1731 = vset.pattern.permute.xlu0 0
  %1732 = vperm.xlu0 %1731, %v1574
  %v1733 = vpop.permute.xlu0 %1732
  %v1767 = vunpack.c.l.b16 %v1479
  %v1768 = vunpack.c.h.b16 %v1479
  %v1769 = vunpack.c.l.b16 %v1480
  %v1770 = vunpack.c.h.b16 %v1480
  %v1771 = vunpack.c.l.b16 %v1481
  %v1772 = vunpack.c.h.b16 %v1481
  %v1773 = vunpack.c.l.b16 %v1482
  %v1774 = vunpack.c.h.b16 %v1482
  %v1775 = vunpack.c.l.b16 %v1483
  %v1776 = vunpack.c.h.b16 %v1483
  %v1777 = vunpack.c.l.b16 %v1484
  %v1778 = vunpack.c.h.b16 %v1484
  %v1779 = vunpack.c.l.b16 %v1485
  %v1780 = vunpack.c.h.b16 %v1485
  %v1781 = vunpack.c.l.b16 %v1486
  %v1782 = vunpack.c.h.b16 %v1486
  %v1783 = vunpack.c.l.b16 %v1487
  %v1784 = vunpack.c.h.b16 %v1487
  %v1785 = vunpack.c.l.b16 %v1488
  %v1786 = vunpack.c.h.b16 %v1488
  %v1787 = vunpack.c.l.b16 %v1489
  %v1788 = vunpack.c.h.b16 %v1489
  %v1789 = vunpack.c.l.b16 %v1490
  %v1790 = vunpack.c.h.b16 %v1490
  %v1791 = vunpack.c.l.b16 %v1491
  %v1792 = vunpack.c.h.b16 %v1491
  %v1793 = vunpack.c.l.b16 %v1492
  %v1794 = vunpack.c.h.b16 %v1492
  %v1795 = vunpack.c.l.b16 %v1493
  %v1796 = vunpack.c.h.b16 %v1493
  %v1797 = vunpack.c.l.b16 %v1494
  %v1798 = vunpack.c.h.b16 %v1494
  %v1799 = vunpack.c.l.b16 %v1495
  %v1800 = vunpack.c.h.b16 %v1495
  %v1801 = vunpack.c.l.b16 %v1496
  %v1802 = vunpack.c.h.b16 %v1496
  %v1803 = vunpack.c.l.b16 %v1497
  %v1804 = vunpack.c.h.b16 %v1497
  %v1805 = vunpack.c.l.b16 %v1498
  %v1806 = vunpack.c.h.b16 %v1498
  %v1807 = vunpack.c.l.b16 %v1499
  %v1808 = vunpack.c.h.b16 %v1499
  %v1809 = vunpack.c.l.b16 %v1500
  %v1810 = vunpack.c.h.b16 %v1500
  %v1811 = vunpack.c.l.b16 %v1501
  %v1812 = vunpack.c.h.b16 %v1501
  %v1813 = vunpack.c.l.b16 %v1502
  %v1814 = vunpack.c.h.b16 %v1502
  %v1815 = vunpack.c.l.b16 %v1503
  %v1816 = vunpack.c.h.b16 %v1503
  %v1817 = vunpack.c.l.b16 %v1504
  %v1818 = vunpack.c.h.b16 %v1504
  %v1819 = vunpack.c.l.b16 %v1505
  %v1820 = vunpack.c.h.b16 %v1505
  %v1821 = vunpack.c.l.b16 %v1506
  %v1822 = vunpack.c.h.b16 %v1506
  %v1823 = vunpack.c.l.b16 %v1507
  %v1824 = vunpack.c.h.b16 %v1507
  %v1825 = vunpack.c.l.b16 %v1508
  %v1826 = vunpack.c.h.b16 %v1508
  %v1827 = vunpack.c.l.b16 %v1509
  %v1828 = vunpack.c.h.b16 %v1509
  %v1829 = vunpack.c.l.b16 %v1510
  %v1830 = vunpack.c.h.b16 %v1510
  %v1831 = vpack.c.b16 %v1769, %v1767
  %v1832 = vpack.c.b16 %v1770, %v1768
  %v1833 = vpack.c.b16 %v1773, %v1771
  %v1834 = vpack.c.b16 %v1774, %v1772
  %v1835 = vpack.c.b16 %v1777, %v1775
  %v1836 = vpack.c.b16 %v1778, %v1776
  %v1837 = vpack.c.b16 %v1781, %v1779
  %v1838 = vpack.c.b16 %v1782, %v1780
  %v1839 = vpack.c.b16 %v1785, %v1783
  %v1840 = vpack.c.b16 %v1786, %v1784
  %v1841 = vpack.c.b16 %v1789, %v1787
  %v1842 = vpack.c.b16 %v1790, %v1788
  %v1843 = vpack.c.b16 %v1793, %v1791
  %v1844 = vpack.c.b16 %v1794, %v1792
  %v1845 = vpack.c.b16 %v1797, %v1795
  %v1846 = vpack.c.b16 %v1798, %v1796
  %v1847 = vpack.c.b16 %v1801, %v1799
  %v1848 = vpack.c.b16 %v1802, %v1800
  %v1849 = vpack.c.b16 %v1805, %v1803
  %v1850 = vpack.c.b16 %v1806, %v1804
  %v1851 = vpack.c.b16 %v1809, %v1807
  %v1852 = vpack.c.b16 %v1810, %v1808
  %v1853 = vpack.c.b16 %v1813, %v1811
  %v1854 = vpack.c.b16 %v1814, %v1812
  %v1855 = vpack.c.b16 %v1817, %v1815
  %v1856 = vpack.c.b16 %v1818, %v1816
  %v1857 = vpack.c.b16 %v1821, %v1819
  %v1858 = vpack.c.b16 %v1822, %v1820
  %v1859 = vpack.c.b16 %v1825, %v1823
  %v1860 = vpack.c.b16 %v1826, %v1824
  %v1861 = vpack.c.b16 %v1829, %v1827
  %v1862 = vpack.c.b16 %v1830, %v1828
  %1895 = vmatprep.subr.bf16.mxu0 %v1526
  %1896 = vmatpush1.bf16.msra.mxu0 %v1525
  %1897 = vmatprep.subr.bf16.mxu0 %v1524
  %1898 = vmatpush1.bf16.msra.mxu0 %v1523
  %1899 = vmatprep.subr.bf16.mxu0 %v1522
  %1900 = vmatpush1.bf16.msra.mxu0 %v1521
  %1901 = vmatprep.subr.bf16.mxu0 %v1520
  %1902 = vmatpush1.bf16.msra.mxu0 %v1519
  %1903 = vmatprep.subr.bf16.mxu0 %v1518
  %1904 = vmatpush1.bf16.msra.mxu0 %v1517
  %1905 = vmatprep.subr.bf16.mxu0 %v1516
  %1906 = vmatpush1.bf16.msra.mxu0 %v1515
  %1907 = vmatprep.subr.bf16.mxu0 %v1514
  %1908 = vmatpush1.bf16.msra.mxu0 %v1513
  %1909 = vmatprep.subr.bf16.mxu0 %v1512
  %1910 = vmatpush1.bf16.msra.mxu0 %v1511
  %1911 = vmatprep.subr.bf16.mxu0 %v1542
  %1912 = vmatpush2.bf16.msra.mxu0 %v1541
  %1913 = vmatprep.subr.bf16.mxu0 %v1540
  %1914 = vmatpush2.bf16.msra.mxu0 %v1539
  %1915 = vmatprep.subr.bf16.mxu0 %v1538
  %1916 = vmatpush2.bf16.msra.mxu0 %v1537
  %1917 = vmatprep.subr.bf16.mxu0 %v1536
  %1918 = vmatpush2.bf16.msra.mxu0 %v1535
  %1919 = vmatprep.subr.bf16.mxu0 %v1534
  %1920 = vmatpush2.bf16.msra.mxu0 %v1533
  %1921 = vmatprep.subr.bf16.mxu0 %v1532
  %1922 = vmatpush2.bf16.msra.mxu0 %v1531
  %1923 = vmatprep.subr.bf16.mxu0 %v1530
  %1924 = vmatpush2.bf16.msra.mxu0 %v1529
  %1925 = vmatprep.subr.bf16.mxu0 %v1528
  %1926 = vmatpush2.bf16.msra.mxu0 %v1527
  %1927 = vmatprep.mubr.bf16.mxu0 %v1832
  %1928 = vmatmul.mubr.bf16.gmra.mxu0 %v1831
  %v1929 = vpop.f32.mrf.mxu0
  %v1930 = vadd.f32 %v1578, %v1929
  %v1931 = vpop.f32.mrf.mxu0
  %v1932 = vadd.f32 %v1578, %v1931
  %v1933 = vpop.f32.mrf.mxu0
  %v1934 = vadd.f32 %v1583, %v1933
  %v1935 = vpop.f32.mrf.mxu0
  %v1936 = vadd.f32 %v1583, %v1935
  %1937 = vmatprep.mubr.bf16.mxu0 %v1834
  %1938 = vmatmul.mubr.bf16.gmra.mxu0 %v1833
  %v1939 = vpop.f32.mrf.mxu0
  %v1940 = vadd.f32 %v1588, %v1939
  %v1941 = vpop.f32.mrf.mxu0
  %v1942 = vadd.f32 %v1588, %v1941
  %v1943 = vpop.f32.mrf.mxu0
  %v1944 = vadd.f32 %v1593, %v1943
  %v1945 = vpop.f32.mrf.mxu0
  %v1946 = vadd.f32 %v1593, %v1945
  %1947 = vmatprep.mubr.bf16.mxu0 %v1836
  %1948 = vmatmul.mubr.bf16.gmra.mxu0 %v1835
  %v1949 = vpop.f32.mrf.mxu0
  %v1950 = vadd.f32 %v1598, %v1949
  %v1951 = vpop.f32.mrf.mxu0
  %v1952 = vadd.f32 %v1598, %v1951
  %v1953 = vpop.f32.mrf.mxu0
  %v1954 = vadd.f32 %v1603, %v1953
  %v1955 = vpop.f32.mrf.mxu0
  %v1956 = vadd.f32 %v1603, %v1955
  %1957 = vmatprep.mubr.bf16.mxu0 %v1838
  %1958 = vmatmul.mubr.bf16.gmra.mxu0 %v1837
  %v1959 = vpop.f32.mrf.mxu0
  %v1960 = vadd.f32 %v1608, %v1959
  %v1961 = vpop.f32.mrf.mxu0
  %v1962 = vadd.f32 %v1608, %v1961
  %v1963 = vpop.f32.mrf.mxu0
  %v1964 = vadd.f32 %v1613, %v1963
  %v1965 = vpop.f32.mrf.mxu0
  %v1966 = vadd.f32 %v1613, %v1965
  %1967 = vmatprep.mubr.bf16.mxu0 %v1840
  %1968 = vmatmul.mubr.bf16.gmra.mxu0 %v1839
  %v1969 = vpop.f32.mrf.mxu0
  %v1970 = vadd.f32 %v1618, %v1969
  %v1971 = vpop.f32.mrf.mxu0
  %v1972 = vadd.f32 %v1618, %v1971
  %v1973 = vpop.f32.mrf.mxu0
  %v1974 = vadd.f32 %v1623, %v1973
  %v1975 = vpop.f32.mrf.mxu0
  %v1976 = vadd.f32 %v1623, %v1975
  %1977 = vmatprep.mubr.bf16.mxu0 %v1842
  %1978 = vmatmul.mubr.bf16.gmra.mxu0 %v1841
  %v1979 = vpop.f32.mrf.mxu0
  %v1980 = vadd.f32 %v1628, %v1979
  %v1981 = vpop.f32.mrf.mxu0
  %v1982 = vadd.f32 %v1628, %v1981
  %v1983 = vpop.f32.mrf.mxu0
  %v1984 = vadd.f32 %v1633, %v1983
  %v1985 = vpop.f32.mrf.mxu0
  %v1986 = vadd.f32 %v1633, %v1985
  %1987 = vmatprep.mubr.bf16.mxu0 %v1844
  %1988 = vmatmul.mubr.bf16.gmra.mxu0 %v1843
  %v1989 = vpop.f32.mrf.mxu0
  %v1990 = vadd.f32 %v1638, %v1989
  %v1991 = vpop.f32.mrf.mxu0
  %v1992 = vadd.f32 %v1638, %v1991
  %v1993 = vpop.f32.mrf.mxu0
  %v1994 = vadd.f32 %v1643, %v1993
  %v1995 = vpop.f32.mrf.mxu0
  %v1996 = vadd.f32 %v1643, %v1995
  %1997 = vmatprep.mubr.bf16.mxu0 %v1846
  %1998 = vmatmul.mubr.bf16.gmra.mxu0 %v1845
  %v1999 = vpop.f32.mrf.mxu0
  %v2000 = vadd.f32 %v1648, %v1999
  %v2001 = vpop.f32.mrf.mxu0
  %v2002 = vadd.f32 %v1648, %v2001
  %v2003 = vpop.f32.mrf.mxu0
  %v2004 = vadd.f32 %v1653, %v2003
  %v2005 = vpop.f32.mrf.mxu0
  %v2006 = vadd.f32 %v1653, %v2005
  %2007 = vmatprep.mubr.bf16.mxu0 %v1848
  %2008 = vmatmul.mubr.bf16.gmra.mxu0 %v1847
  %v2009 = vpop.f32.mrf.mxu0
  %v2010 = vadd.f32 %v1658, %v2009
  %v2011 = vpop.f32.mrf.mxu0
  %v2012 = vadd.f32 %v1658, %v2011
  %v2013 = vpop.f32.mrf.mxu0
  %v2014 = vadd.f32 %v1663, %v2013
  %v2015 = vpop.f32.mrf.mxu0
  %v2016 = vadd.f32 %v1663, %v2015
  %2017 = vmatprep.mubr.bf16.mxu0 %v1850
  %2018 = vmatmul.mubr.bf16.gmra.mxu0 %v1849
  %v2019 = vpop.f32.mrf.mxu0
  %v2020 = vadd.f32 %v1668, %v2019
  %v2021 = vpop.f32.mrf.mxu0
  %v2022 = vadd.f32 %v1668, %v2021
  %v2023 = vpop.f32.mrf.mxu0
  %v2024 = vadd.f32 %v1673, %v2023
  %v2025 = vpop.f32.mrf.mxu0
  %v2026 = vadd.f32 %v1673, %v2025
  %2027 = vmatprep.mubr.bf16.mxu0 %v1852
  %2028 = vmatmul.mubr.bf16.gmra.mxu0 %v1851
  %v2029 = vpop.f32.mrf.mxu0
  %v2030 = vadd.f32 %v1678, %v2029
  %v2031 = vpop.f32.mrf.mxu0
  %v2032 = vadd.f32 %v1678, %v2031
  %v2033 = vpop.f32.mrf.mxu0
  %v2034 = vadd.f32 %v1683, %v2033
  %v2035 = vpop.f32.mrf.mxu0
  %v2036 = vadd.f32 %v1683, %v2035
  %2037 = vmatprep.mubr.bf16.mxu0 %v1854
  %2038 = vmatmul.mubr.bf16.gmra.mxu0 %v1853
  %v2039 = vpop.f32.mrf.mxu0
  %v2040 = vadd.f32 %v1688, %v2039
  %v2041 = vpop.f32.mrf.mxu0
  %v2042 = vadd.f32 %v1688, %v2041
  %v2043 = vpop.f32.mrf.mxu0
  %v2044 = vadd.f32 %v1693, %v2043
  %v2045 = vpop.f32.mrf.mxu0
  %v2046 = vadd.f32 %v1693, %v2045
  %2047 = vmatprep.mubr.bf16.mxu0 %v1856
  %2048 = vmatmul.mubr.bf16.gmra.mxu0 %v1855
  %v2049 = vpop.f32.mrf.mxu0
  %v2050 = vadd.f32 %v1698, %v2049
  %v2051 = vpop.f32.mrf.mxu0
  %v2052 = vadd.f32 %v1698, %v2051
  %v2053 = vpop.f32.mrf.mxu0
  %v2054 = vadd.f32 %v1703, %v2053
  %v2055 = vpop.f32.mrf.mxu0
  %v2056 = vadd.f32 %v1703, %v2055
  %2057 = vmatprep.mubr.bf16.mxu0 %v1858
  %2058 = vmatmul.mubr.bf16.gmra.mxu0 %v1857
  %v2059 = vpop.f32.mrf.mxu0
  %v2060 = vadd.f32 %v1708, %v2059
  %v2061 = vpop.f32.mrf.mxu0
  %v2062 = vadd.f32 %v1708, %v2061
  %v2063 = vpop.f32.mrf.mxu0
  %v2064 = vadd.f32 %v1713, %v2063
  %v2065 = vpop.f32.mrf.mxu0
  %v2066 = vadd.f32 %v1713, %v2065
  %2067 = vmatprep.mubr.bf16.mxu0 %v1860
  %2068 = vmatmul.mubr.bf16.gmra.mxu0 %v1859
  %v2069 = vpop.f32.mrf.mxu0
  %v2070 = vadd.f32 %v1718, %v2069
  %v2071 = vpop.f32.mrf.mxu0
  %v2072 = vadd.f32 %v1718, %v2071
  %v2073 = vpop.f32.mrf.mxu0
  %v2074 = vadd.f32 %v1723, %v2073
  %v2075 = vpop.f32.mrf.mxu0
  %v2076 = vadd.f32 %v1723, %v2075
  %2077 = vmatprep.mubr.bf16.mxu0 %v1862
  %2078 = vmatmul.mubr.bf16.gmra.mxu0 %v1861
  %v2079 = vpop.f32.mrf.mxu0
  %v2080 = vadd.f32 %v1728, %v2079
  %v2081 = vpop.f32.mrf.mxu0
  %v2082 = vadd.f32 %v1728, %v2081
  %v2083 = vpop.f32.mrf.mxu0
  %v2084 = vadd.f32 %v1733, %v2083
  %v2085 = vpop.f32.mrf.mxu0
  %v2086 = vadd.f32 %v1733, %v2085
  %2087 = vdwg.mxu0
  %v2088 = vmax.f32 %v1930, 0.0
  %v2089 = vmax.f32 %v1932, 0.0
  %v2090 = vmax.f32 %v1934, 0.0
  %v2091 = vmax.f32 %v1936, 0.0
  %v2092 = vmax.f32 %v1940, 0.0
  %v2093 = vmax.f32 %v1942, 0.0
  %v2094 = vmax.f32 %v1944, 0.0
  %v2095 = vmax.f32 %v1946, 0.0
  %v2096 = vmax.f32 %v1950, 0.0
  %v2097 = vmax.f32 %v1952, 0.0
  %v2098 = vmax.f32 %v1954, 0.0
  %v2099 = vmax.f32 %v1956, 0.0
  %v2100 = vmax.f32 %v1960, 0.0
  %v2101 = vmax.f32 %v1962, 0.0
  %v2102 = vmax.f32 %v1964, 0.0
  %v2103 = vmax.f32 %v1966, 0.0
  %v2104 = vmax.f32 %v1970, 0.0
  %v2105 = vmax.f32 %v1972, 0.0
  %v2106 = vmax.f32 %v1974, 0.0
  %v2107 = vmax.f32 %v1976, 0.0
  %v2108 = vmax.f32 %v1980, 0.0
  %v2109 = vmax.f32 %v1982, 0.0
  %v2110 = vmax.f32 %v1984, 0.0
  %v2111 = vmax.f32 %v1986, 0.0
  %v2112 = vmax.f32 %v1990, 0.0
  %v2113 = vmax.f32 %v1992, 0.0
  %v2114 = vmax.f32 %v1994, 0.0
  %v2115 = vmax.f32 %v1996, 0.0
  %v2116 = vmax.f32 %v2000, 0.0
  %v2117 = vmax.f32 %v2002, 0.0
  %v2118 = vmax.f32 %v2004, 0.0
  %v2119 = vmax.f32 %v2006, 0.0
  %v2120 = vmax.f32 %v2010, 0.0
  %v2121 = vmax.f32 %v2012, 0.0
  %v2122 = vmax.f32 %v2014, 0.0
  %v2123 = vmax.f32 %v2016, 0.0
  %v2124 = vmax.f32 %v2020, 0.0
  %v2125 = vmax.f32 %v2022, 0.0
  %v2126 = vmax.f32 %v2024, 0.0
  %v2127 = vmax.f32 %v2026, 0.0
  %v2128 = vmax.f32 %v2030, 0.0
  %v2129 = vmax.f32 %v2032, 0.0
  %v2130 = vmax.f32 %v2034, 0.0
  %v2131 = vmax.f32 %v2036, 0.0
  %v2132 = vmax.f32 %v2040, 0.0
  %v2133 = vmax.f32 %v2042, 0.0
  %v2134 = vmax.f32 %v2044, 0.0
  %v2135 = vmax.f32 %v2046, 0.0
  %v2136 = vmax.f32 %v2050, 0.0
  %v2137 = vmax.f32 %v2052, 0.0
  %v2138 = vmax.f32 %v2054, 0.0
  %v2139 = vmax.f32 %v2056, 0.0
  %v2140 = vmax.f32 %v2060, 0.0
  %v2141 = vmax.f32 %v2062, 0.0
  %v2142 = vmax.f32 %v2064, 0.0
  %v2143 = vmax.f32 %v2066, 0.0
  %v2144 = vmax.f32 %v2070, 0.0
  %v2145 = vmax.f32 %v2072, 0.0
  %v2146 = vmax.f32 %v2074, 0.0
  %v2147 = vmax.f32 %v2076, 0.0
  %v2148 = vmax.f32 %v2080, 0.0
  %v2149 = vmax.f32 %v2082, 0.0
  %v2150 = vmax.f32 %v2084, 0.0
  %v2151 = vmax.f32 %v2086, 0.0
  %v2152 = vld [vmem:[%s5] sm:$0x3]
  %v2153 = vpack.c.bf16 %v2090, %v2088
  %v2154 = vpack.c.bf16 %v2091, %v2089
  %v2155 = vpack.c.bf16 %v2094, %v2092
  %v2156 = vpack.c.bf16 %v2095, %v2093
  %v2157 = vpack.c.bf16 %v2098, %v2096
  %v2158 = vpack.c.bf16 %v2099, %v2097
  %v2159 = vpack.c.bf16 %v2102, %v2100
  %v2160 = vpack.c.bf16 %v2103, %v2101
  %v2161 = vpack.c.bf16 %v2106, %v2104
  %v2162 = vpack.c.bf16 %v2107, %v2105
  %v2163 = vpack.c.bf16 %v2110, %v2108
  %v2164 = vpack.c.bf16 %v2111, %v2109
  %v2165 = vpack.c.bf16 %v2114, %v2112
  %v2166 = vpack.c.bf16 %v2115, %v2113
  %v2167 = vpack.c.bf16 %v2118, %v2116
  %v2168 = vpack.c.bf16 %v2119, %v2117
  %v2169 = vpack.c.bf16 %v2122, %v2120
  %v2170 = vpack.c.bf16 %v2123, %v2121
  %v2171 = vpack.c.bf16 %v2126, %v2124
  %v2172 = vpack.c.bf16 %v2127, %v2125
  %v2173 = vpack.c.bf16 %v2130, %v2128
  %v2174 = vpack.c.bf16 %v2131, %v2129
  %v2175 = vpack.c.bf16 %v2134, %v2132
  %v2176 = vpack.c.bf16 %v2135, %v2133
  %v2177 = vpack.c.bf16 %v2138, %v2136
  %v2178 = vpack.c.bf16 %v2139, %v2137
  %v2179 = vpack.c.bf16 %v2142, %v2140
  %v2180 = vpack.c.bf16 %v2143, %v2141
  %v2181 = vpack.c.bf16 %v2146, %v2144
  %v2182 = vpack.c.bf16 %v2147, %v2145
  %v2183 = vpack.c.bf16 %v2150, %v2148
  %v2184 = vpack.c.bf16 %v2151, %v2149
  %v2185 = vld [vmem:[#allocation2] sm:$0x1]
  %2187 = vset.pattern.permute.xlu0 0
  %2188 = vperm.xlu0 %2187, %v2185
  %v2189 = vpop.permute.xlu0 %2188
  %v2191 = vlaneseq
  %v2192 = vshrl.u32 %v2191, 7
  %v2193 = vsub.s32 0, %v2192
  %v2194 = vrot.slane %v2189, %v2193
  %v2197 = vunpack.c.l.s4 1966171168
  %v2198 = vunpack.c.0.s8 %v2197
  %v2199 = vlaneseq
  %v2200 = vshrl.u32 %v2199, 7
  %v2201 = vsub.s32 %v2198, %v2200
  %v2202 = vrot.slane %v2152, %v2201
  %v2203 = vcombine.high %v2202, %v2202
  %v2205 = vunpack.c.l.s4 1966171168
  %v2206 = vunpack.c.0.s8 %v2205
  %v2207 = vlaneseq
  %v2208 = vshrl.u32 %v2207, 7
  %v2209 = vsub.s32 %v2206, %v2208
  %v2210 = vrot.slane %v2202, %v2209
  %v2212 = vunpack.c.l.s4 1966171168
  %v2213 = vunpack.c.0.s8 %v2212
  %v2214 = vlaneseq
  %v2215 = vshrl.u32 %v2214, 7
  %v2216 = vsub.s32 %v2213, %v2215
  %v2217 = vrot.slane %v2203, %v2216
  %2220 = vmatprep.subr.bf16.mxu0 %v2168
  %2221 = vmatpush1.bf16.msra.mxu0 %v2167
  %2222 = vmatprep.subr.bf16.mxu0 %v2166
  %2223 = vmatpush1.bf16.msra.mxu0 %v2165
  %2224 = vmatprep.subr.bf16.mxu0 %v2164
  %2225 = vmatpush1.bf16.msra.mxu0 %v2163
  %2226 = vmatprep.subr.bf16.mxu0 %v2162
  %2227 = vmatpush1.bf16.msra.mxu0 %v2161
  %2228 = vmatprep.subr.bf16.mxu0 %v2160
  %2229 = vmatpush1.bf16.msra.mxu0 %v2159
  %2230 = vmatprep.subr.bf16.mxu0 %v2158
  %2231 = vmatpush1.bf16.msra.mxu0 %v2157
  %2232 = vmatprep.subr.bf16.mxu0 %v2156
  %2233 = vmatpush1.bf16.msra.mxu0 %v2155
  %2234 = vmatprep.subr.bf16.mxu0 %v2154
  %2235 = vmatpush1.bf16.msra.mxu0 %v2153
  %2236 = vmatprep.subr.bf16.mxu0 %v2184
  %2237 = vmatpush2.bf16.msra.mxu0 %v2183
  %2238 = vmatprep.subr.bf16.mxu0 %v2182
  %2239 = vmatpush2.bf16.msra.mxu0 %v2181
  %2240 = vmatprep.subr.bf16.mxu0 %v2180
  %2241 = vmatpush2.bf16.msra.mxu0 %v2179
  %2242 = vmatprep.subr.bf16.mxu0 %v2178
  %2243 = vmatpush2.bf16.msra.mxu0 %v2177
  %2244 = vmatprep.subr.bf16.mxu0 %v2176
  %2245 = vmatpush2.bf16.msra.mxu0 %v2175
  %2246 = vmatprep.subr.bf16.mxu0 %v2174
  %2247 = vmatpush2.bf16.msra.mxu0 %v2173
  %2248 = vmatprep.subr.bf16.mxu0 %v2172
  %2249 = vmatpush2.bf16.msra.mxu0 %v2171
  %2250 = vmatprep.subr.bf16.mxu0 %v2170
  %2251 = vmatpush2.bf16.msra.mxu0 %v2169
  %2252 = vmatprep.mubr.bf16.mxu0 %v2217
  %2253 = vmatmul.mubr.bf16.gmra.mxu0 %v2210
  %v2254 = vpop.f32.mrf.mxu0
  %v2255 = vadd.f32 %v2194, %v2254
  %v2256 = vpop.f32.mrf.mxu0
  %v2257 = vadd.f32 %v2194, %v2256
  %v2258 = vpop.f32.mrf.mxu0
  %v2259 = vpop.f32.mrf.mxu0
  %2260 = vdwg.mxu0
  %v2263 = vcombine.low %v2255, %v2257
  %v2265 = vunpack.c.l.s4 1966171168
  %v2266 = vunpack.c.0.s8 %v2265
  %v2267 = vlaneseq
  %v2268 = vshrl.u32 %v2267, 7
  %v2269 = vsub.s32 %v2266, %v2268
  %v2270 = vrot.slane %v2263, %v2269
  %v2272 = vunpack.c.l.s4 1966171168
  %v2273 = vunpack.c.0.s8 %v2272
  %v2274 = vlaneseq
  %v2275 = vshrl.u32 %v2274, 7
  %v2276 = vsub.s32 %v2273, %v2275
  %v2277 = vrot.slane %v2270, %v2276
  %v2279 = vlaneseq
  %vm2280 = vcmp.ge.s32.totalorder %v2279, 0
  %vm2281 = vcmp.lt.s32.totalorder %v2279, 256
  %vm2282 = vmand %vm2280, %vm2281
  %2283 = vst.msk [vmem:[%s7] sm:$0x3] %vm2282, %v2277
  // Predicated region
  $region30: #{vnetwork_forward.1} parent=0 // pred_check
    _
  $region31: #{vnetwork_forward.1} parent=0 // pred_check_branch
    %2285 = sbr.rel (0) target = $region33
  $region32: #{vnetwork_forward.1} parent=0 // pred_region
    _
  $region33: #{vnetwork_forward.1} parent=0 // pred_fallthru
    _
  // Predicated region
  $region34: #{vnetwork_forward.1} parent=0 // pred_check
    _
  $region35: #{vnetwork_forward.1} parent=0 // pred_check_branch
    %2287 = sbr.rel (0) target = $region37
  $region36: #{vnetwork_forward.1} parent=0 // pred_region
    _
  $region37: #{vnetwork_forward.1} parent=0 // pred_fallthru
    _

</llo_original>
